<compile_context>
chip_gen: v6e
topology: v6e:2x2x1
jax: 0.10.0
libtpu: 0.0.40
codegen_flags: <defaults>
</compile_context>

<pallas_src>
import functools

import jax
import jax.numpy as jnp
from jax.experimental import pallas as pl
from jax.experimental.pallas import tpu as pltpu

NEG_SLOPE = 0.2
LANE = 128
MASK_VAL = -1e30   # additive no-edge bias; fine for f32 and bf16 (same exponent range)


def gat_he_kernel(x_ref, wfull_ref, bias_ref, mask_ref, o_ref, *,
                  num_heads: int, feat: int, nodes: int, graphs_per_block: int):
    """One grid step = `graphs_per_block` independent graphs, all heads.

    x_ref:     [GB*N, Fin]   node features, graphs stacked along rows
    wfull_ref: [Fin, LANEp]  packed operand (W_lin pre-folded):
                 lanes [h*F,(h+1)*F) = W_lin @ Wsrc_h^T
                 lane  H*F + h       = W_lin @ Wsrc_h^T @ att_dst_h
                 lane  H*F + H + h   = W_lin @ Wsrc_h^T @ att_src_h
    bias_ref:  [1, GB*F]     head-mean GATConv bias, tiled over the graph lanes
    mask_ref:  [GB, N, N]    bf16 ADDITIVE mask: 0 on edges j->i (incl. self loops),
                             MASK_VAL elsewhere
    o_ref:     [N, GB*F]     lane-dense output (graph g lives in lanes [g*F,(g+1)*F))
    """
    H, F, N, GB = num_heads, feat, nodes, graphs_per_block

    # Single MXU pass: every head's z_h plus every head's a_dst / a_src score,
    # for every graph in the block.
    z_all = jnp.dot(x_ref[...], wfull_ref[...],
                    preferred_element_type=jnp.float32)            # [GB*N, LANEp]
    # One tile-aligned XLU transpose recovers the source scores in row form for all
    # graphs & heads (replaces the previous m_src @ x^T matmul and its two inputs).
    z_all_t = jnp.transpose(z_all)                                 # [LANEp, GB*N]
    a_src_rows = z_all_t[H * F + H: H * F + 2 * H, :]              # [H, GB*N]

    inv_heads = 1.0 / H
    outs = []
    for g in range(GB):                       # static unroll over graphs in the block
        z_g = z_all[g * N:(g + 1) * N, :]                          # [N, LANEp]
        neg_bias = mask_ref[g].astype(jnp.float32)                 # [N, N], hoisted out of the head loop
        acc = jnp.zeros((N, F), jnp.float32)
        for h in range(H):                    # static unroll over heads (H = 3)
            z_h = z_g[:, h * F:(h + 1) * F]                        # [N, F]
            a_dst = z_g[:, H * F + h: H * F + h + 1]               # [N, 1]
            a_src = a_src_rows[h:h + 1, g * N:(g + 1) * N]         # [1, N]
            e = a_dst + a_src                 # e[i, j] = a_dst[i] + a_src[j]
            e = jnp.where(e > 0, e, NEG_SLOPE * e)                 # leaky_relu (f32 VPU)
            e = e + neg_bias                  # additive -1e30 on non-edges (one add, no select)
            e = e - jnp.max(e, axis=1, keepdims=True)
            p = jnp.exp(e)
            denom = jnp.sum(p, axis=1, keepdims=True)              # >= 1 (self loops)
            # EUP approximate reciprocal; the mean over heads is folded into the scale.
            attn = p * (pl.reciprocal(denom, approx=True) * inv_heads)
            acc = acc + jnp.dot(attn, z_h, preferred_element_type=jnp.float32)
        outs.append(acc)
    # One lane-dense (GB*F = 128 wide) store instead of GB masked partial stores.
    o_ref[...] = jnp.concatenate(outs, axis=1) + bias_ref[...]


def _pack_params(params):
    """Fold W_lin and both attention vectors into ONE lane-dense MXU operand
    (pure JAX, done once per weight set)."""
    w_lin = params["w_lin"]       # [Fin, F]     (torch lin.weight, pre-transposed)
    w_src = params["w_src"]       # [H, F, F]    (pre-transposed: z_h = xp @ w_src[h])
    H, F, _ = w_src.shape
    # v_*[k, h] = sum_f Wsrc_h^T[k, f] * att_*[h, f]
    v_src = jnp.einsum("hkf,hf->kh", w_src, params["att_src"])        # [F, H]
    v_dst = jnp.einsum("hkf,hf->kh", w_src, params["att_dst"])        # [F, H]
    w_heads = jnp.transpose(w_src, (1, 0, 2)).reshape(F, H * F)       # [F, H*F]
    w_pack = jnp.concatenate([w_heads, v_dst, v_src], axis=1)         # [F, H*F + 2H]
    pad = (-w_pack.shape[1]) % LANE
    if pad:
        w_pack = jnp.pad(w_pack, ((0, 0), (0, pad)))                  # lane-pad to 128
    w_full = w_lin @ w_pack                                           # [Fin, LANEp] (W_lin folded in)
    bias_mean = jnp.mean(params["bias"], axis=0, keepdims=True)       # [1, F]
    return w_full, bias_mean


def _build_add_mask(edge_index, num_nodes):
    """Additive attention bias: 0 where edge j->i (or self loop) exists, MASK_VAL
    elsewhere. One scatter, emitted directly in bf16."""
    src, dst = edge_index[0], edge_index[1]
    diag = jnp.arange(num_nodes, dtype=edge_index.dtype)
    rows = jnp.concatenate([dst, diag])
    cols = jnp.concatenate([src, diag])
    full = jnp.full((num_nodes, num_nodes), MASK_VAL, jnp.bfloat16)
    return full.at[rows, cols].set(0.0)


def gat_he_forward(x, edge_index, edge_weight, params, graphs_per_block=4):
    """Batched GAT_HE forward: B independent graphs per call, `graphs_per_block`
    graphs per grid step, lane-dense [N, GB*F] output tiles.

    x: [B, N, Fin]    edge_index: [B, 2, E]    edge_weight: [B, E, 1]
    returns [B, N, F]
    """
    # GAT_HE's forward computes edge_embedding(edge_weight), but its GATConv heads
    # are built with edge_dim=None so PyG ignores edge_attr -> the lookup has no
    # effect on the output; skip it (saves an [E, Fin] HBM gather).
    del edge_weight

    b, n, f_in = x.shape
    h, f, _ = params["w_src"].shape
    gb = graphs_per_block
    assert b % gb == 0, "batch must be a multiple of graphs_per_block"
    nb = b // gb

    w_full, bias_mean = _pack_params(params)
    lanes = w_full.shape[1]
    bias_tiled = jnp.tile(bias_mean, (1, gb))                         # [1, GB*F]
    mask = jax.vmap(lambda ei: _build_add_mask(ei, n))(edge_index)    # [B, N, N] bf16
    x_stacked = x.reshape(b * n, f_in)                                # graphs stacked on rows

    kernel = functools.partial(gat_he_kernel, num_heads=h, feat=f,
                               nodes=n, graphs_per_block=gb)
    # TODO(synk): at realistic graph sizes, tile over (dst-block, src-block) with an
    # online softmax, build the additive mask per tile in VMEM from scalar-prefetched
    # edge lists (PrefetchScalarGridSpec) instead of materialising a dense [N,N] mask
    # in HBM, cast MXU operands to bf16, and size tiles against the generation's VMEM
    # (64 MiB on v7x) via pltpu.CompilerParams(vmem_limit_bytes=...).
    out2d = pl.pallas_call(
        kernel,
        out_shape=jax.ShapeDtypeStruct((nb * n, gb * f), jnp.float32),
        grid_spec=pltpu.PrefetchScalarGridSpec(
            num_scalar_prefetch=0,
            grid=(nb,),
            in_specs=[
                pl.BlockSpec((gb * n, f_in), lambda i: (i, 0)),   # node features
                pl.BlockSpec((f_in, lanes), lambda i: (0, 0)),    # packed weights (shared)
                pl.BlockSpec((1, gb * f), lambda i: (0, 0)),      # tiled mean bias (shared)
                pl.BlockSpec((gb, n, n), lambda i: (i, 0, 0)),    # additive adjacency mask
            ],
            out_specs=pl.BlockSpec((n, gb * f), lambda i: (i, 0)),
        ),
        compiler_params=pltpu.CompilerParams(
            dimension_semantics=("parallel",)),                   # uses the 2nd TC on v7x
    )(x_stacked, w_full, bias_tiled, mask)

    # [NB*N, GB*F] -> [B, N, F]
    return (out2d.reshape(nb, n, gb, f)
                 .transpose(0, 2, 1, 3)
                 .reshape(b, n, f))


def _reference_jax(x, edge_index, params, num_nodes):
    """Pure-JAX reference of the same per-graph math for a correctness check."""
    src, dst = edge_index[0], edge_index[1]
    adj = jnp.zeros((num_nodes, num_nodes), jnp.float32).at[dst, src].set(1.0)
    diag = jnp.arange(num_nodes)
    adj = adj.at[diag, diag].set(1.0)
    xp = x @ params["w_lin"]
    outs = []
    for h in range(params["w_src"].shape[0]):
        z = xp @ params["w_src"][h]
        a_src = jnp.sum(z * params["att_src"][h][None, :], axis=-1, keepdims=True)
        a_dst = jnp.sum(z * params["att_dst"][h][None, :], axis=-1, keepdims=True)
        e = a_dst + a_src.T
        e = jnp.where(e > 0, e, NEG_SLOPE * e)
        e = jnp.where(adj > 0, e, -jnp.inf)
        attn = jax.nn.softmax(e, axis=1)
        outs.append(attn @ z + params["bias"][h][None, :])
    return jnp.mean(jnp.stack(outs, 0), axis=0)


if __name__ == "__main__":
    N = 16          # nodes per graph
    F_IN = 32       # in_channels (== out_channels, required by the reference forward)
    F_OUT = 32
    H = 3           # num_heads (3 independent single-head GATConvs)
    E = 24          # edges per graph
    B = 8           # graphs per call
    GB = 4          # graphs per grid step -> GB*F = 128-lane output tiles, grid=(2,)
    NUM_EMB = 22754

    key = jax.random.PRNGKey(0)
    ks = jax.random.split(key, 10)

    x = jax.random.normal(ks[0], (B, N, F_IN), jnp.float32)
    edge_index = jax.random.randint(ks[1], (B, 2, E), 0, N, jnp.int32)
    edge_weight = jax.random.randint(ks[2], (B, E, 1), 0, NUM_EMB, jnp.int32)

    scale = 0.1
    params = {
        # lin: torch weight [F_OUT, F_IN]; stored transposed [F_IN, F_OUT]
        "w_lin": scale * jax.random.normal(ks[3], (F_IN, F_OUT), jnp.float32),
        # per-head GATConv lin_src weight [F_OUT, F_OUT], stored transposed, stacked
        "w_src": scale * jax.random.normal(ks[4], (H, F_OUT, F_OUT), jnp.float32),
        "att_src": scale * jax.random.normal(ks[5], (H, F_OUT), jnp.float32),
        "att_dst": scale * jax.random.normal(ks[6], (H, F_OUT), jnp.float32),
        "bias": scale * jax.random.normal(ks[7], (H, F_OUT), jnp.float32),
        # present for interface fidelity; unused by the forward (see gat_he_forward)
        "edge_embedding": scale * jax.random.normal(ks[8], (NUM_EMB, F_IN), jnp.float32),
    }

    fwd = jax.jit(gat_he_forward, static_argnames=("graphs_per_block",))
    out = jax.block_until_ready(fwd(x, edge_index, edge_weight, params,
                                    graphs_per_block=GB))
    assert out.shape == (B, N, F_OUT)

    err = 0.0
    for g in range(B):
        ref = _reference_jax(x[g], edge_index[g], params, N)
        err = max(err, float(jnp.max(jnp.abs(out[g] - ref))))
    # Tolerance covers the EUP approximate reciprocal + matmul re-association; a
    # structural bug would produce errors orders of magnitude larger.
    assert err < 5e-3, f"kernel mismatch vs JAX reference (max abs err = {err})"
    print("KERNEL_OK")
</pallas_src>

<mosaic_0001>
module attributes {stable_mosaic.version = 11 : i64} {
  func.func @gat_he_kernel(%arg0: i32, %arg1: memref<64x32xf32, #tpu.memory_space<vmem>>, %arg2: memref<32x128xf32, #tpu.memory_space<vmem>>, %arg3: memref<1x128xf32, #tpu.memory_space<vmem>>, %arg4: memref<4x16x16xbf16, #tpu.memory_space<vmem>>, %arg5: memref<16x128xf32, #tpu.memory_space<vmem>>) attributes {dimension_semantics = [#tpu.dimension_semantics<parallel>], iteration_bounds = array<i64: 2>, scalar_prefetch = 0 : i64, scratch_operands = 0 : i64, tpu.core_type = #tpu.core_type<tc>, window_params = [{transform_indices = @transform_0, window_bounds = array<i64: 64, 32>}, {pipeline_mode = #tpu.pipeline_mode<synchronous>, transform_indices = @transform_1, window_bounds = array<i64: 32, 128>}, {pipeline_mode = #tpu.pipeline_mode<synchronous>, transform_indices = @transform_2, window_bounds = array<i64: 1, 128>}, {transform_indices = @transform_3, window_bounds = array<i64: 4, 16, 16>}, {transform_indices = @transform_4, window_bounds = array<i64: 16, 128>}]} {
    %c0 = arith.constant 0 : index
    %c0_0 = arith.constant 0 : index
    %0 = vector.load %arg1[%c0, %c0_0] : memref<64x32xf32, #tpu.memory_space<vmem>>, vector<64x32xf32>
    %c0_1 = arith.constant 0 : index
    %c0_2 = arith.constant 0 : index
    %1 = vector.load %arg2[%c0_1, %c0_2] : memref<32x128xf32, #tpu.memory_space<vmem>>, vector<32x128xf32>
    %cst = arith.constant dense<0.000000e+00> : vector<64x128xf32>
    %2 = tpu.matmul %0, %1, %cst {dimension_numbers = #tpu.dot_dimension_numbers<[1], [0], [0], [1], [0, 0, 1, 1], [], []>} : vector<64x32xf32>, vector<32x128xf32>, vector<64x128xf32> -> vector<64x128xf32>
    %3 = tpu.transpose %2, [1, 0] : vector<64x128xf32> -> vector<128x64xf32>
    %4 = vector.extract_strided_slice %3 {offsets = [99, 0], sizes = [3, 64], strides = [1, 1]} : vector<128x64xf32> to vector<3x64xf32>
    %5 = vector.extract_strided_slice %2 {offsets = [0, 0], sizes = [16, 128], strides = [1, 1]} : vector<64x128xf32> to vector<16x128xf32>
    %c0_3 = arith.constant 0 : index
    %c0_4 = arith.constant 0 : index
    %c0_5 = arith.constant 0 : index
    %6 = vector.load %arg4[%c0_3, %c0_4, %c0_5] : memref<4x16x16xbf16, #tpu.memory_space<vmem>>, vector<1x16x16xbf16>
    %7 = vector.shape_cast %6 : vector<1x16x16xbf16> to vector<16x16xbf16>
    %8 = arith.extf %7 : vector<16x16xbf16> to vector<16x16xf32>
    %cst_6 = arith.constant 0.000000e+00 : f32
    %9 = vector.broadcast %cst_6 : f32 to vector<16x32xf32>
    %10 = vector.extract_strided_slice %5 {offsets = [0, 0], sizes = [16, 32], strides = [1, 1]} : vector<16x128xf32> to vector<16x32xf32>
    %11 = vector.extract_strided_slice %5 {offsets = [0, 96], sizes = [16, 1], strides = [1, 1]} : vector<16x128xf32> to vector<16x1xf32>
    %12 = vector.extract_strided_slice %4 {offsets = [0, 0], sizes = [1, 16], strides = [1, 1]} : vector<3x64xf32> to vector<1x16xf32>
    %13 = vector.broadcast %11 : vector<16x1xf32> to vector<16x16xf32>
    %14 = vector.broadcast %12 : vector<1x16xf32> to vector<16x16xf32>
    %15 = arith.addf %13, %14 : vector<16x16xf32>
    %cst_7 = arith.constant 0.000000e+00 : f32
    %16 = vector.broadcast %cst_7 : f32 to vector<16x16xf32>
    %17 = arith.cmpf ogt, %15, %16 : vector<16x16xf32>
    %cst_8 = arith.constant 2.000000e-01 : f32
    %18 = vector.broadcast %cst_8 : f32 to vector<16x16xf32>
    %19 = arith.mulf %18, %15 : vector<16x16xf32>
    %20 = arith.select %17, %15, %19 : vector<16x16xi1>, vector<16x16xf32>
    %21 = arith.addf %20, %8 : vector<16x16xf32>
    %cst_9 = arith.constant dense<0xFF800000> : vector<16xf32>
    %22 = vector.multi_reduction <maximumf>, %21, %cst_9 [1] : vector<16x16xf32> to vector<16xf32>
    %23 = vector.shape_cast %22 : vector<16xf32> to vector<16x1xf32>
    %24 = vector.broadcast %23 : vector<16x1xf32> to vector<16x16xf32>
    %25 = arith.subf %21, %24 : vector<16x16xf32>
    %26 = math.exp %25 : vector<16x16xf32>
    %cst_10 = arith.constant dense<0.000000e+00> : vector<16xf32>
    %27 = vector.multi_reduction <add>, %26, %cst_10 [1] : vector<16x16xf32> to vector<16xf32>
    %28 = vector.shape_cast %27 : vector<16xf32> to vector<16x1xf32>
    %29 = tpu.reciprocal %28 {approx = true} : vector<16x1xf32> -> vector<16x1xf32>
    %cst_11 = arith.constant 0.333333343 : f32
    %30 = vector.broadcast %cst_11 : f32 to vector<16x1xf32>
    %31 = arith.mulf %29, %30 : vector<16x1xf32>
    %32 = vector.broadcast %31 : vector<16x1xf32> to vector<16x16xf32>
    %33 = arith.mulf %26, %32 : vector<16x16xf32>
    %cst_12 = arith.constant dense<0.000000e+00> : vector<16x32xf32>
    %34 = tpu.matmul %33, %10, %cst_12 {dimension_numbers = #tpu.dot_dimension_numbers<[1], [0], [0], [1], [0, 0, 1, 1], [], []>} : vector<16x16xf32>, vector<16x32xf32>, vector<16x32xf32> -> vector<16x32xf32>
    %35 = arith.addf %9, %34 : vector<16x32xf32>
    %36 = vector.extract_strided_slice %5 {offsets = [0, 32], sizes = [16, 32], strides = [1, 1]} : vector<16x128xf32> to vector<16x32xf32>
    %37 = vector.extract_strided_slice %5 {offsets = [0, 97], sizes = [16, 1], strides = [1, 1]} : vector<16x128xf32> to vector<16x1xf32>
    %38 = vector.extract_strided_slice %4 {offsets = [1, 0], sizes = [1, 16], strides = [1, 1]} : vector<3x64xf32> to vector<1x16xf32>
    %39 = vector.broadcast %37 : vector<16x1xf32> to vector<16x16xf32>
    %40 = vector.broadcast %38 : vector<1x16xf32> to vector<16x16xf32>
    %41 = arith.addf %39, %40 : vector<16x16xf32>
    %cst_13 = arith.constant 0.000000e+00 : f32
    %42 = vector.broadcast %cst_13 : f32 to vector<16x16xf32>
    %43 = arith.cmpf ogt, %41, %42 : vector<16x16xf32>
    %cst_14 = arith.constant 2.000000e-01 : f32
    %44 = vector.broadcast %cst_14 : f32 to vector<16x16xf32>
    %45 = arith.mulf %44, %41 : vector<16x16xf32>
    %46 = arith.select %43, %41, %45 : vector<16x16xi1>, vector<16x16xf32>
    %47 = arith.addf %46, %8 : vector<16x16xf32>
    %cst_15 = arith.constant dense<0xFF800000> : vector<16xf32>
    %48 = vector.multi_reduction <maximumf>, %47, %cst_15 [1] : vector<16x16xf32> to vector<16xf32>
    %49 = vector.shape_cast %48 : vector<16xf32> to vector<16x1xf32>
    %50 = vector.broadcast %49 : vector<16x1xf32> to vector<16x16xf32>
    %51 = arith.subf %47, %50 : vector<16x16xf32>
    %52 = math.exp %51 : vector<16x16xf32>
    %cst_16 = arith.constant dense<0.000000e+00> : vector<16xf32>
    %53 = vector.multi_reduction <add>, %52, %cst_16 [1] : vector<16x16xf32> to vector<16xf32>
    %54 = vector.shape_cast %53 : vector<16xf32> to vector<16x1xf32>
    %55 = tpu.reciprocal %54 {approx = true} : vector<16x1xf32> -> vector<16x1xf32>
    %cst_17 = arith.constant 0.333333343 : f32
    %56 = vector.broadcast %cst_17 : f32 to vector<16x1xf32>
    %57 = arith.mulf %55, %56 : vector<16x1xf32>
    %58 = vector.broadcast %57 : vector<16x1xf32> to vector<16x16xf32>
    %59 = arith.mulf %52, %58 : vector<16x16xf32>
    %cst_18 = arith.constant dense<0.000000e+00> : vector<16x32xf32>
    %60 = tpu.matmul %59, %36, %cst_18 {dimension_numbers = #tpu.dot_dimension_numbers<[1], [0], [0], [1], [0, 0, 1, 1], [], []>} : vector<16x16xf32>, vector<16x32xf32>, vector<16x32xf32> -> vector<16x32xf32>
    %61 = arith.addf %35, %60 : vector<16x32xf32>
    %62 = vector.extract_strided_slice %5 {offsets = [0, 64], sizes = [16, 32], strides = [1, 1]} : vector<16x128xf32> to vector<16x32xf32>
    %63 = vector.extract_strided_slice %5 {offsets = [0, 98], sizes = [16, 1], strides = [1, 1]} : vector<16x128xf32> to vector<16x1xf32>
    %64 = vector.extract_strided_slice %4 {offsets = [2, 0], sizes = [1, 16], strides = [1, 1]} : vector<3x64xf32> to vector<1x16xf32>
    %65 = vector.broadcast %63 : vector<16x1xf32> to vector<16x16xf32>
    %66 = vector.broadcast %64 : vector<1x16xf32> to vector<16x16xf32>
    %67 = arith.addf %65, %66 : vector<16x16xf32>
    %cst_19 = arith.constant 0.000000e+00 : f32
    %68 = vector.broadcast %cst_19 : f32 to vector<16x16xf32>
    %69 = arith.cmpf ogt, %67, %68 : vector<16x16xf32>
    %cst_20 = arith.constant 2.000000e-01 : f32
    %70 = vector.broadcast %cst_20 : f32 to vector<16x16xf32>
    %71 = arith.mulf %70, %67 : vector<16x16xf32>
    %72 = arith.select %69, %67, %71 : vector<16x16xi1>, vector<16x16xf32>
    %73 = arith.addf %72, %8 : vector<16x16xf32>
    %cst_21 = arith.constant dense<0xFF800000> : vector<16xf32>
    %74 = vector.multi_reduction <maximumf>, %73, %cst_21 [1] : vector<16x16xf32> to vector<16xf32>
    %75 = vector.shape_cast %74 : vector<16xf32> to vector<16x1xf32>
    %76 = vector.broadcast %75 : vector<16x1xf32> to vector<16x16xf32>
    %77 = arith.subf %73, %76 : vector<16x16xf32>
    %78 = math.exp %77 : vector<16x16xf32>
    %cst_22 = arith.constant dense<0.000000e+00> : vector<16xf32>
    %79 = vector.multi_reduction <add>, %78, %cst_22 [1] : vector<16x16xf32> to vector<16xf32>
    %80 = vector.shape_cast %79 : vector<16xf32> to vector<16x1xf32>
    %81 = tpu.reciprocal %80 {approx = true} : vector<16x1xf32> -> vector<16x1xf32>
    %cst_23 = arith.constant 0.333333343 : f32
    %82 = vector.broadcast %cst_23 : f32 to vector<16x1xf32>
    %83 = arith.mulf %81, %82 : vector<16x1xf32>
    %84 = vector.broadcast %83 : vector<16x1xf32> to vector<16x16xf32>
    %85 = arith.mulf %78, %84 : vector<16x16xf32>
    %cst_24 = arith.constant dense<0.000000e+00> : vector<16x32xf32>
    %86 = tpu.matmul %85, %62, %cst_24 {dimension_numbers = #tpu.dot_dimension_numbers<[1], [0], [0], [1], [0, 0, 1, 1], [], []>} : vector<16x16xf32>, vector<16x32xf32>, vector<16x32xf32> -> vector<16x32xf32>
    %87 = arith.addf %61, %86 : vector<16x32xf32>
    %88 = vector.extract_strided_slice %2 {offsets = [16, 0], sizes = [16, 128], strides = [1, 1]} : vector<64x128xf32> to vector<16x128xf32>
    %c1 = arith.constant 1 : index
    %c0_25 = arith.constant 0 : index
    %c0_26 = arith.constant 0 : index
    %89 = vector.load %arg4[%c1, %c0_25, %c0_26] : memref<4x16x16xbf16, #tpu.memory_space<vmem>>, vector<1x16x16xbf16>
    %90 = vector.shape_cast %89 : vector<1x16x16xbf16> to vector<16x16xbf16>
    %91 = arith.extf %90 : vector<16x16xbf16> to vector<16x16xf32>
    %cst_27 = arith.constant 0.000000e+00 : f32
    %92 = vector.broadcast %cst_27 : f32 to vector<16x32xf32>
    %93 = vector.extract_strided_slice %88 {offsets = [0, 0], sizes = [16, 32], strides = [1, 1]} : vector<16x128xf32> to vector<16x32xf32>
    %94 = vector.extract_strided_slice %88 {offsets = [0, 96], sizes = [16, 1], strides = [1, 1]} : vector<16x128xf32> to vector<16x1xf32>
    %95 = vector.extract_strided_slice %4 {offsets = [0, 16], sizes = [1, 16], strides = [1, 1]} : vector<3x64xf32> to vector<1x16xf32>
    %96 = vector.broadcast %94 : vector<16x1xf32> to vector<16x16xf32>
    %97 = vector.broadcast %95 : vector<1x16xf32> to vector<16x16xf32>
    %98 = arith.addf %96, %97 : vector<16x16xf32>
    %cst_28 = arith.constant 0.000000e+00 : f32
    %99 = vector.broadcast %cst_28 : f32 to vector<16x16xf32>
    %100 = arith.cmpf ogt, %98, %99 : vector<16x16xf32>
    %cst_29 = arith.constant 2.000000e-01 : f32
    %101 = vector.broadcast %cst_29 : f32 to vector<16x16xf32>
    %102 = arith.mulf %101, %98 : vector<16x16xf32>
    %103 = arith.select %100, %98, %102 : vector<16x16xi1>, vector<16x16xf32>
    %104 = arith.addf %103, %91 : vector<16x16xf32>
    %cst_30 = arith.constant dense<0xFF800000> : vector<16xf32>
    %105 = vector.multi_reduction <maximumf>, %104, %cst_30 [1] : vector<16x16xf32> to vector<16xf32>
    %106 = vector.shape_cast %105 : vector<16xf32> to vector<16x1xf32>
    %107 = vector.broadcast %106 : vector<16x1xf32> to vector<16x16xf32>
    %108 = arith.subf %104, %107 : vector<16x16xf32>
    %109 = math.exp %108 : vector<16x16xf32>
    %cst_31 = arith.constant dense<0.000000e+00> : vector<16xf32>
    %110 = vector.multi_reduction <add>, %109, %cst_31 [1] : vector<16x16xf32> to vector<16xf32>
    %111 = vector.shape_cast %110 : vector<16xf32> to vector<16x1xf32>
    %112 = tpu.reciprocal %111 {approx = true} : vector<16x1xf32> -> vector<16x1xf32>
    %cst_32 = arith.constant 0.333333343 : f32
    %113 = vector.broadcast %cst_32 : f32 to vector<16x1xf32>
    %114 = arith.mulf %112, %113 : vector<16x1xf32>
    %115 = vector.broadcast %114 : vector<16x1xf32> to vector<16x16xf32>
    %116 = arith.mulf %109, %115 : vector<16x16xf32>
    %cst_33 = arith.constant dense<0.000000e+00> : vector<16x32xf32>
    %117 = tpu.matmul %116, %93, %cst_33 {dimension_numbers = #tpu.dot_dimension_numbers<[1], [0], [0], [1], [0, 0, 1, 1], [], []>} : vector<16x16xf32>, vector<16x32xf32>, vector<16x32xf32> -> vector<16x32xf32>
    %118 = arith.addf %92, %117 : vector<16x32xf32>
    %119 = vector.extract_strided_slice %88 {offsets = [0, 32], sizes = [16, 32], strides = [1, 1]} : vector<16x128xf32> to vector<16x32xf32>
    %120 = vector.extract_strided_slice %88 {offsets = [0, 97], sizes = [16, 1], strides = [1, 1]} : vector<16x128xf32> to vector<16x1xf32>
    %121 = vector.extract_strided_slice %4 {offsets = [1, 16], sizes = [1, 16], strides = [1, 1]} : vector<3x64xf32> to vector<1x16xf32>
    %122 = vector.broadcast %120 : vector<16x1xf32> to vector<16x16xf32>
    %123 = vector.broadcast %121 : vector<1x16xf32> to vector<16x16xf32>
    %124 = arith.addf %122, %123 : vector<16x16xf32>
    %cst_34 = arith.constant 0.000000e+00 : f32
    %125 = vector.broadcast %cst_34 : f32 to vector<16x16xf32>
    %126 = arith.cmpf ogt, %124, %125 : vector<16x16xf32>
    %cst_35 = arith.constant 2.000000e-01 : f32
    %127 = vector.broadcast %cst_35 : f32 to vector<16x16xf32>
    %128 = arith.mulf %127, %124 : vector<16x16xf32>
    %129 = arith.select %126, %124, %128 : vector<16x16xi1>, vector<16x16xf32>
    %130 = arith.addf %129, %91 : vector<16x16xf32>
    %cst_36 = arith.constant dense<0xFF800000> : vector<16xf32>
    %131 = vector.multi_reduction <maximumf>, %130, %cst_36 [1] : vector<16x16xf32> to vector<16xf32>
    %132 = vector.shape_cast %131 : vector<16xf32> to vector<16x1xf32>
    %133 = vector.broadcast %132 : vector<16x1xf32> to vector<16x16xf32>
    %134 = arith.subf %130, %133 : vector<16x16xf32>
    %135 = math.exp %134 : vector<16x16xf32>
    %cst_37 = arith.constant dense<0.000000e+00> : vector<16xf32>
    %136 = vector.multi_reduction <add>, %135, %cst_37 [1] : vector<16x16xf32> to vector<16xf32>
    %137 = vector.shape_cast %136 : vector<16xf32> to vector<16x1xf32>
    %138 = tpu.reciprocal %137 {approx = true} : vector<16x1xf32> -> vector<16x1xf32>
    %cst_38 = arith.constant 0.333333343 : f32
    %139 = vector.broadcast %cst_38 : f32 to vector<16x1xf32>
    %140 = arith.mulf %138, %139 : vector<16x1xf32>
    %141 = vector.broadcast %140 : vector<16x1xf32> to vector<16x16xf32>
    %142 = arith.mulf %135, %141 : vector<16x16xf32>
    %cst_39 = arith.constant dense<0.000000e+00> : vector<16x32xf32>
    %143 = tpu.matmul %142, %119, %cst_39 {dimension_numbers = #tpu.dot_dimension_numbers<[1], [0], [0], [1], [0, 0, 1, 1], [], []>} : vector<16x16xf32>, vector<16x32xf32>, vector<16x32xf32> -> vector<16x32xf32>
    %144 = arith.addf %118, %143 : vector<16x32xf32>
    %145 = vector.extract_strided_slice %88 {offsets = [0, 64], sizes = [16, 32], strides = [1, 1]} : vector<16x128xf32> to vector<16x32xf32>
    %146 = vector.extract_strided_slice %88 {offsets = [0, 98], sizes = [16, 1], strides = [1, 1]} : vector<16x128xf32> to vector<16x1xf32>
    %147 = vector.extract_strided_slice %4 {offsets = [2, 16], sizes = [1, 16], strides = [1, 1]} : vector<3x64xf32> to vector<1x16xf32>
    %148 = vector.broadcast %146 : vector<16x1xf32> to vector<16x16xf32>
    %149 = vector.broadcast %147 : vector<1x16xf32> to vector<16x16xf32>
    %150 = arith.addf %148, %149 : vector<16x16xf32>
    %cst_40 = arith.constant 0.000000e+00 : f32
    %151 = vector.broadcast %cst_40 : f32 to vector<16x16xf32>
    %152 = arith.cmpf ogt, %150, %151 : vector<16x16xf32>
    %cst_41 = arith.constant 2.000000e-01 : f32
    %153 = vector.broadcast %cst_41 : f32 to vector<16x16xf32>
    %154 = arith.mulf %153, %150 : vector<16x16xf32>
    %155 = arith.select %152, %150, %154 : vector<16x16xi1>, vector<16x16xf32>
    %156 = arith.addf %155, %91 : vector<16x16xf32>
    %cst_42 = arith.constant dense<0xFF800000> : vector<16xf32>
    %157 = vector.multi_reduction <maximumf>, %156, %cst_42 [1] : vector<16x16xf32> to vector<16xf32>
    %158 = vector.shape_cast %157 : vector<16xf32> to vector<16x1xf32>
    %159 = vector.broadcast %158 : vector<16x1xf32> to vector<16x16xf32>
    %160 = arith.subf %156, %159 : vector<16x16xf32>
    %161 = math.exp %160 : vector<16x16xf32>
    %cst_43 = arith.constant dense<0.000000e+00> : vector<16xf32>
    %162 = vector.multi_reduction <add>, %161, %cst_43 [1] : vector<16x16xf32> to vector<16xf32>
    %163 = vector.shape_cast %162 : vector<16xf32> to vector<16x1xf32>
    %164 = tpu.reciprocal %163 {approx = true} : vector<16x1xf32> -> vector<16x1xf32>
    %cst_44 = arith.constant 0.333333343 : f32
    %165 = vector.broadcast %cst_44 : f32 to vector<16x1xf32>
    %166 = arith.mulf %164, %165 : vector<16x1xf32>
    %167 = vector.broadcast %166 : vector<16x1xf32> to vector<16x16xf32>
    %168 = arith.mulf %161, %167 : vector<16x16xf32>
    %cst_45 = arith.constant dense<0.000000e+00> : vector<16x32xf32>
    %169 = tpu.matmul %168, %145, %cst_45 {dimension_numbers = #tpu.dot_dimension_numbers<[1], [0], [0], [1], [0, 0, 1, 1], [], []>} : vector<16x16xf32>, vector<16x32xf32>, vector<16x32xf32> -> vector<16x32xf32>
    %170 = arith.addf %144, %169 : vector<16x32xf32>
    %171 = vector.extract_strided_slice %2 {offsets = [32, 0], sizes = [16, 128], strides = [1, 1]} : vector<64x128xf32> to vector<16x128xf32>
    %c2 = arith.constant 2 : index
    %c0_46 = arith.constant 0 : index
    %c0_47 = arith.constant 0 : index
    %172 = vector.load %arg4[%c2, %c0_46, %c0_47] : memref<4x16x16xbf16, #tpu.memory_space<vmem>>, vector<1x16x16xbf16>
    %173 = vector.shape_cast %172 : vector<1x16x16xbf16> to vector<16x16xbf16>
    %174 = arith.extf %173 : vector<16x16xbf16> to vector<16x16xf32>
    %cst_48 = arith.constant 0.000000e+00 : f32
    %175 = vector.broadcast %cst_48 : f32 to vector<16x32xf32>
    %176 = vector.extract_strided_slice %171 {offsets = [0, 0], sizes = [16, 32], strides = [1, 1]} : vector<16x128xf32> to vector<16x32xf32>
    %177 = vector.extract_strided_slice %171 {offsets = [0, 96], sizes = [16, 1], strides = [1, 1]} : vector<16x128xf32> to vector<16x1xf32>
    %178 = vector.extract_strided_slice %4 {offsets = [0, 32], sizes = [1, 16], strides = [1, 1]} : vector<3x64xf32> to vector<1x16xf32>
    %179 = vector.broadcast %177 : vector<16x1xf32> to vector<16x16xf32>
    %180 = vector.broadcast %178 : vector<1x16xf32> to vector<16x16xf32>
    %181 = arith.addf %179, %180 : vector<16x16xf32>
    %cst_49 = arith.constant 0.000000e+00 : f32
    %182 = vector.broadcast %cst_49 : f32 to vector<16x16xf32>
    %183 = arith.cmpf ogt, %181, %182 : vector<16x16xf32>
    %cst_50 = arith.constant 2.000000e-01 : f32
    %184 = vector.broadcast %cst_50 : f32 to vector<16x16xf32>
    %185 = arith.mulf %184, %181 : vector<16x16xf32>
    %186 = arith.select %183, %181, %185 : vector<16x16xi1>, vector<16x16xf32>
    %187 = arith.addf %186, %174 : vector<16x16xf32>
    %cst_51 = arith.constant dense<0xFF800000> : vector<16xf32>
    %188 = vector.multi_reduction <maximumf>, %187, %cst_51 [1] : vector<16x16xf32> to vector<16xf32>
    %189 = vector.shape_cast %188 : vector<16xf32> to vector<16x1xf32>
    %190 = vector.broadcast %189 : vector<16x1xf32> to vector<16x16xf32>
    %191 = arith.subf %187, %190 : vector<16x16xf32>
    %192 = math.exp %191 : vector<16x16xf32>
    %cst_52 = arith.constant dense<0.000000e+00> : vector<16xf32>
    %193 = vector.multi_reduction <add>, %192, %cst_52 [1] : vector<16x16xf32> to vector<16xf32>
    %194 = vector.shape_cast %193 : vector<16xf32> to vector<16x1xf32>
    %195 = tpu.reciprocal %194 {approx = true} : vector<16x1xf32> -> vector<16x1xf32>
    %cst_53 = arith.constant 0.333333343 : f32
    %196 = vector.broadcast %cst_53 : f32 to vector<16x1xf32>
    %197 = arith.mulf %195, %196 : vector<16x1xf32>
    %198 = vector.broadcast %197 : vector<16x1xf32> to vector<16x16xf32>
    %199 = arith.mulf %192, %198 : vector<16x16xf32>
    %cst_54 = arith.constant dense<0.000000e+00> : vector<16x32xf32>
    %200 = tpu.matmul %199, %176, %cst_54 {dimension_numbers = #tpu.dot_dimension_numbers<[1], [0], [0], [1], [0, 0, 1, 1], [], []>} : vector<16x16xf32>, vector<16x32xf32>, vector<16x32xf32> -> vector<16x32xf32>
    %201 = arith.addf %175, %200 : vector<16x32xf32>
    %202 = vector.extract_strided_slice %171 {offsets = [0, 32], sizes = [16, 32], strides = [1, 1]} : vector<16x128xf32> to vector<16x32xf32>
    %203 = vector.extract_strided_slice %171 {offsets = [0, 97], sizes = [16, 1], strides = [1, 1]} : vector<16x128xf32> to vector<16x1xf32>
    %204 = vector.extract_strided_slice %4 {offsets = [1, 32], sizes = [1, 16], strides = [1, 1]} : vector<3x64xf32> to vector<1x16xf32>
    %205 = vector.broadcast %203 : vector<16x1xf32> to vector<16x16xf32>
    %206 = vector.broadcast %204 : vector<1x16xf32> to vector<16x16xf32>
    %207 = arith.addf %205, %206 : vector<16x16xf32>
    %cst_55 = arith.constant 0.000000e+00 : f32
    %208 = vector.broadcast %cst_55 : f32 to vector<16x16xf32>
    %209 = arith.cmpf ogt, %207, %208 : vector<16x16xf32>
    %cst_56 = arith.constant 2.000000e-01 : f32
    %210 = vector.broadcast %cst_56 : f32 to vector<16x16xf32>
    %211 = arith.mulf %210, %207 : vector<16x16xf32>
    %212 = arith.select %209, %207, %211 : vector<16x16xi1>, vector<16x16xf32>
    %213 = arith.addf %212, %174 : vector<16x16xf32>
    %cst_57 = arith.constant dense<0xFF800000> : vector<16xf32>
    %214 = vector.multi_reduction <maximumf>, %213, %cst_57 [1] : vector<16x16xf32> to vector<16xf32>
    %215 = vector.shape_cast %214 : vector<16xf32> to vector<16x1xf32>
    %216 = vector.broadcast %215 : vector<16x1xf32> to vector<16x16xf32>
    %217 = arith.subf %213, %216 : vector<16x16xf32>
    %218 = math.exp %217 : vector<16x16xf32>
    %cst_58 = arith.constant dense<0.000000e+00> : vector<16xf32>
    %219 = vector.multi_reduction <add>, %218, %cst_58 [1] : vector<16x16xf32> to vector<16xf32>
    %220 = vector.shape_cast %219 : vector<16xf32> to vector<16x1xf32>
    %221 = tpu.reciprocal %220 {approx = true} : vector<16x1xf32> -> vector<16x1xf32>
    %cst_59 = arith.constant 0.333333343 : f32
    %222 = vector.broadcast %cst_59 : f32 to vector<16x1xf32>
    %223 = arith.mulf %221, %222 : vector<16x1xf32>
    %224 = vector.broadcast %223 : vector<16x1xf32> to vector<16x16xf32>
    %225 = arith.mulf %218, %224 : vector<16x16xf32>
    %cst_60 = arith.constant dense<0.000000e+00> : vector<16x32xf32>
    %226 = tpu.matmul %225, %202, %cst_60 {dimension_numbers = #tpu.dot_dimension_numbers<[1], [0], [0], [1], [0, 0, 1, 1], [], []>} : vector<16x16xf32>, vector<16x32xf32>, vector<16x32xf32> -> vector<16x32xf32>
    %227 = arith.addf %201, %226 : vector<16x32xf32>
    %228 = vector.extract_strided_slice %171 {offsets = [0, 64], sizes = [16, 32], strides = [1, 1]} : vector<16x128xf32> to vector<16x32xf32>
    %229 = vector.extract_strided_slice %171 {offsets = [0, 98], sizes = [16, 1], strides = [1, 1]} : vector<16x128xf32> to vector<16x1xf32>
    %230 = vector.extract_strided_slice %4 {offsets = [2, 32], sizes = [1, 16], strides = [1, 1]} : vector<3x64xf32> to vector<1x16xf32>
    %231 = vector.broadcast %229 : vector<16x1xf32> to vector<16x16xf32>
    %232 = vector.broadcast %230 : vector<1x16xf32> to vector<16x16xf32>
    %233 = arith.addf %231, %232 : vector<16x16xf32>
    %cst_61 = arith.constant 0.000000e+00 : f32
    %234 = vector.broadcast %cst_61 : f32 to vector<16x16xf32>
    %235 = arith.cmpf ogt, %233, %234 : vector<16x16xf32>
    %cst_62 = arith.constant 2.000000e-01 : f32
    %236 = vector.broadcast %cst_62 : f32 to vector<16x16xf32>
    %237 = arith.mulf %236, %233 : vector<16x16xf32>
    %238 = arith.select %235, %233, %237 : vector<16x16xi1>, vector<16x16xf32>
    %239 = arith.addf %238, %174 : vector<16x16xf32>
    %cst_63 = arith.constant dense<0xFF800000> : vector<16xf32>
    %240 = vector.multi_reduction <maximumf>, %239, %cst_63 [1] : vector<16x16xf32> to vector<16xf32>
    %241 = vector.shape_cast %240 : vector<16xf32> to vector<16x1xf32>
    %242 = vector.broadcast %241 : vector<16x1xf32> to vector<16x16xf32>
    %243 = arith.subf %239, %242 : vector<16x16xf32>
    %244 = math.exp %243 : vector<16x16xf32>
    %cst_64 = arith.constant dense<0.000000e+00> : vector<16xf32>
    %245 = vector.multi_reduction <add>, %244, %cst_64 [1] : vector<16x16xf32> to vector<16xf32>
    %246 = vector.shape_cast %245 : vector<16xf32> to vector<16x1xf32>
    %247 = tpu.reciprocal %246 {approx = true} : vector<16x1xf32> -> vector<16x1xf32>
    %cst_65 = arith.constant 0.333333343 : f32
    %248 = vector.broadcast %cst_65 : f32 to vector<16x1xf32>
    %249 = arith.mulf %247, %248 : vector<16x1xf32>
    %250 = vector.broadcast %249 : vector<16x1xf32> to vector<16x16xf32>
    %251 = arith.mulf %244, %250 : vector<16x16xf32>
    %cst_66 = arith.constant dense<0.000000e+00> : vector<16x32xf32>
    %252 = tpu.matmul %251, %228, %cst_66 {dimension_numbers = #tpu.dot_dimension_numbers<[1], [0], [0], [1], [0, 0, 1, 1], [], []>} : vector<16x16xf32>, vector<16x32xf32>, vector<16x32xf32> -> vector<16x32xf32>
    %253 = arith.addf %227, %252 : vector<16x32xf32>
    %254 = vector.extract_strided_slice %2 {offsets = [48, 0], sizes = [16, 128], strides = [1, 1]} : vector<64x128xf32> to vector<16x128xf32>
    %c3 = arith.constant 3 : index
    %c0_67 = arith.constant 0 : index
    %c0_68 = arith.constant 0 : index
    %255 = vector.load %arg4[%c3, %c0_67, %c0_68] : memref<4x16x16xbf16, #tpu.memory_space<vmem>>, vector<1x16x16xbf16>
    %256 = vector.shape_cast %255 : vector<1x16x16xbf16> to vector<16x16xbf16>
    %257 = arith.extf %256 : vector<16x16xbf16> to vector<16x16xf32>
    %cst_69 = arith.constant 0.000000e+00 : f32
    %258 = vector.broadcast %cst_69 : f32 to vector<16x32xf32>
    %259 = vector.extract_strided_slice %254 {offsets = [0, 0], sizes = [16, 32], strides = [1, 1]} : vector<16x128xf32> to vector<16x32xf32>
    %260 = vector.extract_strided_slice %254 {offsets = [0, 96], sizes = [16, 1], strides = [1, 1]} : vector<16x128xf32> to vector<16x1xf32>
    %261 = vector.extract_strided_slice %4 {offsets = [0, 48], sizes = [1, 16], strides = [1, 1]} : vector<3x64xf32> to vector<1x16xf32>
    %262 = vector.broadcast %260 : vector<16x1xf32> to vector<16x16xf32>
    %263 = vector.broadcast %261 : vector<1x16xf32> to vector<16x16xf32>
    %264 = arith.addf %262, %263 : vector<16x16xf32>
    %cst_70 = arith.constant 0.000000e+00 : f32
    %265 = vector.broadcast %cst_70 : f32 to vector<16x16xf32>
    %266 = arith.cmpf ogt, %264, %265 : vector<16x16xf32>
    %cst_71 = arith.constant 2.000000e-01 : f32
    %267 = vector.broadcast %cst_71 : f32 to vector<16x16xf32>
    %268 = arith.mulf %267, %264 : vector<16x16xf32>
    %269 = arith.select %266, %264, %268 : vector<16x16xi1>, vector<16x16xf32>
    %270 = arith.addf %269, %257 : vector<16x16xf32>
    %cst_72 = arith.constant dense<0xFF800000> : vector<16xf32>
    %271 = vector.multi_reduction <maximumf>, %270, %cst_72 [1] : vector<16x16xf32> to vector<16xf32>
    %272 = vector.shape_cast %271 : vector<16xf32> to vector<16x1xf32>
    %273 = vector.broadcast %272 : vector<16x1xf32> to vector<16x16xf32>
    %274 = arith.subf %270, %273 : vector<16x16xf32>
    %275 = math.exp %274 : vector<16x16xf32>
    %cst_73 = arith.constant dense<0.000000e+00> : vector<16xf32>
    %276 = vector.multi_reduction <add>, %275, %cst_73 [1] : vector<16x16xf32> to vector<16xf32>
    %277 = vector.shape_cast %276 : vector<16xf32> to vector<16x1xf32>
    %278 = tpu.reciprocal %277 {approx = true} : vector<16x1xf32> -> vector<16x1xf32>
    %cst_74 = arith.constant 0.333333343 : f32
    %279 = vector.broadcast %cst_74 : f32 to vector<16x1xf32>
    %280 = arith.mulf %278, %279 : vector<16x1xf32>
    %281 = vector.broadcast %280 : vector<16x1xf32> to vector<16x16xf32>
    %282 = arith.mulf %275, %281 : vector<16x16xf32>
    %cst_75 = arith.constant dense<0.000000e+00> : vector<16x32xf32>
    %283 = tpu.matmul %282, %259, %cst_75 {dimension_numbers = #tpu.dot_dimension_numbers<[1], [0], [0], [1], [0, 0, 1, 1], [], []>} : vector<16x16xf32>, vector<16x32xf32>, vector<16x32xf32> -> vector<16x32xf32>
    %284 = arith.addf %258, %283 : vector<16x32xf32>
    %285 = vector.extract_strided_slice %254 {offsets = [0, 32], sizes = [16, 32], strides = [1, 1]} : vector<16x128xf32> to vector<16x32xf32>
    %286 = vector.extract_strided_slice %254 {offsets = [0, 97], sizes = [16, 1], strides = [1, 1]} : vector<16x128xf32> to vector<16x1xf32>
    %287 = vector.extract_strided_slice %4 {offsets = [1, 48], sizes = [1, 16], strides = [1, 1]} : vector<3x64xf32> to vector<1x16xf32>
    %288 = vector.broadcast %286 : vector<16x1xf32> to vector<16x16xf32>
    %289 = vector.broadcast %287 : vector<1x16xf32> to vector<16x16xf32>
    %290 = arith.addf %288, %289 : vector<16x16xf32>
    %cst_76 = arith.constant 0.000000e+00 : f32
    %291 = vector.broadcast %cst_76 : f32 to vector<16x16xf32>
    %292 = arith.cmpf ogt, %290, %291 : vector<16x16xf32>
    %cst_77 = arith.constant 2.000000e-01 : f32
    %293 = vector.broadcast %cst_77 : f32 to vector<16x16xf32>
    %294 = arith.mulf %293, %290 : vector<16x16xf32>
    %295 = arith.select %292, %290, %294 : vector<16x16xi1>, vector<16x16xf32>
    %296 = arith.addf %295, %257 : vector<16x16xf32>
    %cst_78 = arith.constant dense<0xFF800000> : vector<16xf32>
    %297 = vector.multi_reduction <maximumf>, %296, %cst_78 [1] : vector<16x16xf32> to vector<16xf32>
    %298 = vector.shape_cast %297 : vector<16xf32> to vector<16x1xf32>
    %299 = vector.broadcast %298 : vector<16x1xf32> to vector<16x16xf32>
    %300 = arith.subf %296, %299 : vector<16x16xf32>
    %301 = math.exp %300 : vector<16x16xf32>
    %cst_79 = arith.constant dense<0.000000e+00> : vector<16xf32>
    %302 = vector.multi_reduction <add>, %301, %cst_79 [1] : vector<16x16xf32> to vector<16xf32>
    %303 = vector.shape_cast %302 : vector<16xf32> to vector<16x1xf32>
    %304 = tpu.reciprocal %303 {approx = true} : vector<16x1xf32> -> vector<16x1xf32>
    %cst_80 = arith.constant 0.333333343 : f32
    %305 = vector.broadcast %cst_80 : f32 to vector<16x1xf32>
    %306 = arith.mulf %304, %305 : vector<16x1xf32>
    %307 = vector.broadcast %306 : vector<16x1xf32> to vector<16x16xf32>
    %308 = arith.mulf %301, %307 : vector<16x16xf32>
    %cst_81 = arith.constant dense<0.000000e+00> : vector<16x32xf32>
    %309 = tpu.matmul %308, %285, %cst_81 {dimension_numbers = #tpu.dot_dimension_numbers<[1], [0], [0], [1], [0, 0, 1, 1], [], []>} : vector<16x16xf32>, vector<16x32xf32>, vector<16x32xf32> -> vector<16x32xf32>
    %310 = arith.addf %284, %309 : vector<16x32xf32>
    %311 = vector.extract_strided_slice %254 {offsets = [0, 64], sizes = [16, 32], strides = [1, 1]} : vector<16x128xf32> to vector<16x32xf32>
    %312 = vector.extract_strided_slice %254 {offsets = [0, 98], sizes = [16, 1], strides = [1, 1]} : vector<16x128xf32> to vector<16x1xf32>
    %313 = vector.extract_strided_slice %4 {offsets = [2, 48], sizes = [1, 16], strides = [1, 1]} : vector<3x64xf32> to vector<1x16xf32>
    %314 = vector.broadcast %312 : vector<16x1xf32> to vector<16x16xf32>
    %315 = vector.broadcast %313 : vector<1x16xf32> to vector<16x16xf32>
    %316 = arith.addf %314, %315 : vector<16x16xf32>
    %cst_82 = arith.constant 0.000000e+00 : f32
    %317 = vector.broadcast %cst_82 : f32 to vector<16x16xf32>
    %318 = arith.cmpf ogt, %316, %317 : vector<16x16xf32>
    %cst_83 = arith.constant 2.000000e-01 : f32
    %319 = vector.broadcast %cst_83 : f32 to vector<16x16xf32>
    %320 = arith.mulf %319, %316 : vector<16x16xf32>
    %321 = arith.select %318, %316, %320 : vector<16x16xi1>, vector<16x16xf32>
    %322 = arith.addf %321, %257 : vector<16x16xf32>
    %cst_84 = arith.constant dense<0xFF800000> : vector<16xf32>
    %323 = vector.multi_reduction <maximumf>, %322, %cst_84 [1] : vector<16x16xf32> to vector<16xf32>
    %324 = vector.shape_cast %323 : vector<16xf32> to vector<16x1xf32>
    %325 = vector.broadcast %324 : vector<16x1xf32> to vector<16x16xf32>
    %326 = arith.subf %322, %325 : vector<16x16xf32>
    %327 = math.exp %326 : vector<16x16xf32>
    %cst_85 = arith.constant dense<0.000000e+00> : vector<16xf32>
    %328 = vector.multi_reduction <add>, %327, %cst_85 [1] : vector<16x16xf32> to vector<16xf32>
    %329 = vector.shape_cast %328 : vector<16xf32> to vector<16x1xf32>
    %330 = tpu.reciprocal %329 {approx = true} : vector<16x1xf32> -> vector<16x1xf32>
    %cst_86 = arith.constant 0.333333343 : f32
    %331 = vector.broadcast %cst_86 : f32 to vector<16x1xf32>
    %332 = arith.mulf %330, %331 : vector<16x1xf32>
    %333 = vector.broadcast %332 : vector<16x1xf32> to vector<16x16xf32>
    %334 = arith.mulf %327, %333 : vector<16x16xf32>
    %cst_87 = arith.constant dense<0.000000e+00> : vector<16x32xf32>
    %335 = tpu.matmul %334, %311, %cst_87 {dimension_numbers = #tpu.dot_dimension_numbers<[1], [0], [0], [1], [0, 0, 1, 1], [], []>} : vector<16x16xf32>, vector<16x32xf32>, vector<16x32xf32> -> vector<16x32xf32>
    %336 = arith.addf %310, %335 : vector<16x32xf32>
    %337 = tpu.concatenate %87, %170, %253, %336 in 1 : vector<16x32xf32>, vector<16x32xf32>, vector<16x32xf32>, vector<16x32xf32> -> vector<16x128xf32>
    %c0_88 = arith.constant 0 : index
    %c0_89 = arith.constant 0 : index
    %338 = vector.load %arg3[%c0_88, %c0_89] : memref<1x128xf32, #tpu.memory_space<vmem>>, vector<1x128xf32>
    %339 = vector.broadcast %338 : vector<1x128xf32> to vector<16x128xf32>
    %340 = arith.addf %337, %339 : vector<16x128xf32>
    %c0_90 = arith.constant 0 : index
    %c0_91 = arith.constant 0 : index
    %341 = vector.load %arg5[%c0_90, %c0_91] : memref<16x128xf32, #tpu.memory_space<vmem>>, vector<16x128xf32>
    tpu.vector_store %arg5[%c0_90, %c0_91], %340 {strides = array<i32>} : memref<16x128xf32, #tpu.memory_space<vmem>>, vector<16x128xf32>,
    return
  }
  func.func @transform_0(%arg0: i32) -> (i32, i32) {
    %c0_i32 = arith.constant 0 : i32
    %c0_i32_0 = arith.constant 0 : i32
    return %arg0, %c0_i32 : i32, i32
  }
  func.func @transform_1(%arg0: i32) -> (i32, i32) {
    %c0_i32 = arith.constant 0 : i32
    %c0_i32_0 = arith.constant 0 : i32
    %c0_i32_1 = arith.constant 0 : i32
    return %c0_i32, %c0_i32_0 : i32, i32
  }
  func.func @transform_2(%arg0: i32) -> (i32, i32) {
    %c0_i32 = arith.constant 0 : i32
    %c0_i32_0 = arith.constant 0 : i32
    %c0_i32_1 = arith.constant 0 : i32
    return %c0_i32, %c0_i32_0 : i32, i32
  }
  func.func @transform_3(%arg0: i32) -> (i32, i32, i32) {
    %c0_i32 = arith.constant 0 : i32
    %c0_i32_0 = arith.constant 0 : i32
    %c0_i32_1 = arith.constant 0 : i32
    return %arg0, %c0_i32, %c0_i32_0 : i32, i32, i32
  }
  func.func @transform_4(%arg0: i32) -> (i32, i32) {
    %c0_i32 = arith.constant 0 : i32
    %c0_i32_0 = arith.constant 0 : i32
    return %arg0, %c0_i32 : i32, i32
  }
}

</mosaic_0001>

<llo_original>
// kernel: gat_he_forward.1
$region0: #{gat_he_forward.1}
  #allocation0 [shape = 'u32[]', space=smem, size = 0x4, offset = 0x4, fixed_abs, tag = 'smem constant byte address 0x4 - core index']
  #allocation1 [shape = 'u32[144,128]{1,0:T(1,128)}', space=vmem, size = 0x12000, scoped, tag = 'internal scratch']
  %s0 = inlined_call_operand.vmem [shape: f32[128,32], index: 0, kind: input, shape index: {}]
  %s1 = inlined_call_operand.vmem [shape: f32[32,128], index: 1, kind: input, shape index: {}]
  %s2 = inlined_call_operand.vmem [shape: f32[1,128], index: 2, kind: input, shape index: {}]
  %s3 = inlined_call_operand.vmem [shape: bf16[8,16,16], index: 3, kind: input, shape index: {}]
  %s4 = inlined_call_operand.vmem [shape: f32[32,128], index: 4, kind: output, shape index: {}]
  %s5 = sld [smem:[#allocation0]]
  $region49: #{gat_he_forward.1} parent=0
    _
  %s7 = ssub.s32 1, %s5
  %s8 = scalar_select 0, %s7, %s5
  loop: start=0, step=1, limit=4
  $region2: #{gat_he_forward.1} parent=0 // loop_pre_header
    _
  $region3: #{gat_he_forward.1} parent=0 // loop_header
    %s10 = sphi 0, %s14
    %p11 = scmp.ge.s32.totalorder %s10, 4
    %s20 = sphi 0, %s22
    %s23 = sphi 0, %s20
    %s24 = sphi 0, %s23
    %s40 = sphi 0, %s24
    %s44 = sphi 0, %s44
    %s46 = sphi 0, %s44
    %s47 = sphi 0, %s46
    %s61 = sphi 0, %s47
    %s65 = sphi 0, %s65
    %s67 = sphi 0, %s65
    %s68 = sphi 0, %s67
    %s82 = sphi 0, %s68
    %s88 = sphi 0, %s90
    %s91 = sphi 0, %s88
    %s92 = sphi 0, %s91
    %s108 = sphi 0, %s92
    %s114 = sphi 0, %s116
    %s117 = sphi 0, %s114
    %s118 = sphi 0, %s117
    %s134 = sphi 0, %s118
  $region4: #{gat_he_forward.1} parent=0 // loop_header_branch
    %13 = sbr.rel (%p11) target = $region8
  $region5: #{gat_he_forward.1} parent=0 // loop_body
    %s15 = ssub.s32 %s10, 1
    %s16 = ssub.s32 %s10, 2
    %s17 = sadd.s32 %s10, 1
    %s18 = ssub.s32 %s10, %s17
    %p19 = scmp.eq.s32.totalorder %s18, 0
    %s21 = sadd.s32 %s20, 1
    %s22 = scalar_select %p19, %s20, %s21
    %p25 = pneg %p19
    %p26 = scmp.eq.s32.totalorder %s10, 1
    %p27 = por %p25, %p26
    %p28 = scmp.ne.s32.totalorder %s20, %s23
    %p29 = scmp.eq.s32.totalorder %s10, 0
    %p30 = por %p28, %p29
    %p31 = scmp.ne.s32.totalorder %s20, %s23
    %p32 = scmp.eq.s32.totalorder %s15, 1
    %p33 = por %p31, %p32
    %p34 = scmp.ne.s32.totalorder %s23, %s24
    %p35 = scmp.eq.s32.totalorder %s15, 0
    %p36 = por %p34, %p35
    %p37 = scmp.ne.s32.totalorder %s23, %s24
    %p38 = scmp.eq.s32.totalorder %s16, 1
    %p39 = por %p37, %p38
    %p41 = scmp.ne.s32.totalorder %s24, %s40
    %p42 = scmp.eq.s32.totalorder %s16, 0
    %p43 = por %p41, %p42
    %s45 = sadd.s32 %s44, 1
    %p48 = scmp.eq.s32.totalorder %s10, 1
    %p49 = scmp.ne.s32.totalorder %s44, %s46
    %p50 = scmp.eq.s32.totalorder %s10, 0
    %p51 = por %p49, %p50
    %p52 = scmp.ne.s32.totalorder %s44, %s46
    %p53 = scmp.eq.s32.totalorder %s15, 1
    %p54 = por %p52, %p53
    %p55 = scmp.ne.s32.totalorder %s46, %s47
    %p56 = scmp.eq.s32.totalorder %s15, 0
    %p57 = por %p55, %p56
    %p58 = scmp.ne.s32.totalorder %s46, %s47
    %p59 = scmp.eq.s32.totalorder %s16, 1
    %p60 = por %p58, %p59
    %p62 = scmp.ne.s32.totalorder %s47, %s61
    %p63 = scmp.eq.s32.totalorder %s16, 0
    %p64 = por %p62, %p63
    %s66 = sadd.s32 %s65, 1
    %p69 = scmp.eq.s32.totalorder %s10, 1
    %p70 = scmp.ne.s32.totalorder %s65, %s67
    %p71 = scmp.eq.s32.totalorder %s10, 0
    %p72 = por %p70, %p71
    %p73 = scmp.ne.s32.totalorder %s65, %s67
    %p74 = scmp.eq.s32.totalorder %s15, 1
    %p75 = por %p73, %p74
    %p76 = scmp.ne.s32.totalorder %s67, %s68
    %p77 = scmp.eq.s32.totalorder %s15, 0
    %p78 = por %p76, %p77
    %p79 = scmp.ne.s32.totalorder %s67, %s68
    %p80 = scmp.eq.s32.totalorder %s16, 1
    %p81 = por %p79, %p80
    %p83 = scmp.ne.s32.totalorder %s68, %s82
    %p84 = scmp.eq.s32.totalorder %s16, 0
    %p85 = por %p83, %p84
    %s86 = ssub.s32 %s10, %s17
    %p87 = scmp.eq.s32.totalorder %s86, 0
    %s89 = sadd.s32 %s88, 1
    %s90 = scalar_select %p87, %s88, %s89
    %p93 = pneg %p87
    %p94 = scmp.eq.s32.totalorder %s10, 1
    %p95 = por %p93, %p94
    %p96 = scmp.ne.s32.totalorder %s88, %s91
    %p97 = scmp.eq.s32.totalorder %s10, 0
    %p98 = por %p96, %p97
    %p99 = scmp.ne.s32.totalorder %s88, %s91
    %p100 = scmp.eq.s32.totalorder %s15, 1
    %p101 = por %p99, %p100
    %p102 = scmp.ne.s32.totalorder %s91, %s92
    %p103 = scmp.eq.s32.totalorder %s15, 0
    %p104 = por %p102, %p103
    %p105 = scmp.ne.s32.totalorder %s91, %s92
    %p106 = scmp.eq.s32.totalorder %s16, 1
    %p107 = por %p105, %p106
    %p109 = scmp.ne.s32.totalorder %s92, %s108
    %p110 = scmp.eq.s32.totalorder %s16, 0
    %p111 = por %p109, %p110
    %s112 = ssub.s32 %s10, %s17
    %p113 = scmp.eq.s32.totalorder %s112, 0
    %s115 = sadd.s32 %s114, 1
    %s116 = scalar_select %p113, %s114, %s115
    %p119 = pneg %p113
    %p120 = scmp.eq.s32.totalorder %s10, 1
    %p121 = por %p119, %p120
    %p122 = scmp.ne.s32.totalorder %s114, %s117
    %p123 = scmp.eq.s32.totalorder %s10, 0
    %p124 = por %p122, %p123
    %p125 = scmp.ne.s32.totalorder %s114, %s117
    %p126 = scmp.eq.s32.totalorder %s15, 1
    %p127 = por %p125, %p126
    %p128 = scmp.ne.s32.totalorder %s117, %s118
    %p129 = scmp.eq.s32.totalorder %s15, 0
    %p130 = por %p128, %p129
    %p131 = scmp.ne.s32.totalorder %s117, %s118
    %p132 = scmp.eq.s32.totalorder %s16, 1
    %p133 = por %p131, %p132
    %p135 = scmp.ne.s32.totalorder %s118, %s134
    %p136 = scmp.eq.s32.totalorder %s16, 0
    %p137 = por %p135, %p136
    %p138 = scmp.le.s32.totalorder 1, %s10
    %p139 = scmp.lt.s32.totalorder %s10, 3
    %p140 = pnand %p138, %p139
    %p141 = pneg %p140
    // Predicated region
    $region9: #{gat_he_forward.1} parent=5 // pred_check
      _
    $region10: #{gat_he_forward.1} parent=5 // pred_check_branch
      %143 = sbr.rel (%p140) target = $region12
    $region11: #{gat_he_forward.1} parent=5 // pred_region
      %s144 = ssub.s32 %s10, 1
      // Predicated region
      $region13: #{gat_he_forward.1} parent=11 // pred_check
        %p145 = pneg %p57
      $region14: #{gat_he_forward.1} parent=11 // pred_check_branch
        %147 = sbr.rel (%p145) target = $region16
      $region15: #{gat_he_forward.1} parent=11 // pred_region
        _
      $region16: #{gat_he_forward.1} parent=11 // pred_fallthru
        _
      // Predicated region
      $region17: #{gat_he_forward.1} parent=11 // pred_check
        %p148 = pneg %p78
      $region18: #{gat_he_forward.1} parent=11 // pred_check_branch
        %150 = sbr.rel (%p148) target = $region20
      $region19: #{gat_he_forward.1} parent=11 // pred_region
        _
      $region20: #{gat_he_forward.1} parent=11 // pred_fallthru
        _
    $region12: #{gat_he_forward.1} parent=5 // pred_fallthru
      _
    %p151 = scmp.lt.s32.totalorder %s10, 2
    // Predicated region
    $region21: #{gat_he_forward.1} parent=5 // pred_check
      %p152 = pneg %p151
    $region22: #{gat_he_forward.1} parent=5 // pred_check_branch
      %154 = sbr.rel (%p152) target = $region24
    $region23: #{gat_he_forward.1} parent=5 // pred_region
      // Predicated region
      $region25: #{gat_he_forward.1} parent=23 // pred_check
        %p155 = pneg %p30
      $region26: #{gat_he_forward.1} parent=23 // pred_check_branch
        %157 = sbr.rel (%p155) target = $region28
      $region27: #{gat_he_forward.1} parent=23 // pred_region
        %s158 = smul.u32 8, %s10
        %p159 = scmp.lt.s32.totalorder %s158, 15
        %s160 = scalar_select %p159, %s158, 15
        %s161 = smul.addr %s160, 8
        %s162 = scalar_lea.vmem %s0, %s161
        %s163 = smul.u32 8, %s10
      $region28: #{gat_he_forward.1} parent=23 // pred_fallthru
        _
      // Predicated region
      $region29: #{gat_he_forward.1} parent=23 // pred_check
        %p164 = pneg %p98
      $region30: #{gat_he_forward.1} parent=23 // pred_check_branch
        %166 = sbr.rel (%p164) target = $region32
      $region31: #{gat_he_forward.1} parent=23 // pred_region
        %s167 = smul.u32 4, %s10
        %p168 = scmp.lt.s32.totalorder %s167, 7
        %s169 = scalar_select %p168, %s167, 7
        %s170 = smul.addr %s169, 2
        %s171 = smul.addr %s170, 4
        %s172 = scalar_lea.vmem %s3, %s171
        %s173 = smul.u32 4, %s10
      $region32: #{gat_he_forward.1} parent=23 // pred_fallthru
        _
    $region24: #{gat_he_forward.1} parent=5 // pred_fallthru
      _
    %p174 = scmp.le.s32.totalorder 1, %s10
    %p175 = scmp.lt.s32.totalorder %s10, 3
    %p176 = pnand %p174, %p175
    %p177 = pneg %p176
    // Predicated region
    $region33: #{gat_he_forward.1} parent=5 // pred_check
      _
    $region34: #{gat_he_forward.1} parent=5 // pred_check_branch
      %179 = sbr.rel (%p176) target = $region36
    $region35: #{gat_he_forward.1} parent=5 // pred_region
      %s180 = ssub.s32 %s10, 1
      %s181 = smul.u32 8, %s15
      %p182 = scmp.lt.s32.totalorder %s181, 15
      %s183 = scalar_select %p182, %s181, 15
      %s184 = smul.addr %s183, 8
      %s185 = scalar_lea.vmem %s0, %s184
      %p186 = pneg %p36
      %p187 = pneg %p33
      %p188 = pneg %p57
      %p189 = pneg %p54
      %p190 = pneg %p78
      %p191 = pneg %p75
      %s192 = smul.u32 4, %s15
      %p193 = scmp.lt.s32.totalorder %s192, 7
      %s194 = scalar_select %p193, %s192, 7
      %s195 = smul.addr %s194, 2
      %s196 = smul.addr %s195, 4
      %s197 = scalar_lea.vmem %s3, %s196
      %p198 = pneg %p104
      %p199 = pneg %p101
      %p200 = pneg %p130
      %p201 = pneg %p127
      %s202 = smul.u32 2, %s15
      %p203 = scmp.lt.s32.totalorder %s202, 3
      %s204 = scalar_select %p203, %s202, 3
      %s205 = smul.addr %s204, 8
      %s206 = scalar_lea.vmem %s4, %s205
      %s207 = smul.u32 8, %s15
      %p208 = scmp.lt.s32.totalorder %s207, 15
      %s209 = scalar_select %p208, %s207, 15
      %s210 = smul.addr %s209, 8
      %s211 = scalar_lea.vmem %s0, %s210
      %s212 = smul.u32 8, %s15
      %s213 = smul.u32 4, %s15
      %p214 = scmp.lt.s32.totalorder %s213, 7
      %s215 = scalar_select %p214, %s213, 7
      %s216 = smul.addr %s215, 2
      %s217 = smul.addr %s216, 4
      %s218 = scalar_lea.vmem %s3, %s217
      %s219 = smul.u32 4, %s15
      %s220 = smul.u32 2, %s15
      %p221 = scmp.lt.s32.totalorder %s220, 3
      %s222 = scalar_select %p221, %s220, 3
      %s223 = smul.addr %s222, 8
      %s224 = scalar_lea.vmem %s4, %s223
      %s225 = smul.u32 2, %s15
      %v226 = vld [vmem:[%s211] sm:$0xff]
      %v227 = vld [vmem:[%s211 + $0x8] sm:$0xff]
      %v228 = vld [vmem:[%s211 + $0x10] sm:$0xff]
      %v229 = vld [vmem:[%s211 + $0x18] sm:$0xff]
      %v230 = vld [vmem:[%s211 + $0x20] sm:$0xff]
      %v231 = vld [vmem:[%s211 + $0x28] sm:$0xff]
      %v232 = vld [vmem:[%s211 + $0x30] sm:$0xff]
      %v233 = vld [vmem:[%s211 + $0x38] sm:$0xff]
      %v234 = vld [vmem:[%s1] sm:$0xff]
      %v235 = vld [vmem:[%s1 + $0x8] sm:$0xff]
      %v236 = vld [vmem:[%s1 + $0x10] sm:$0xff]
      %v237 = vld [vmem:[%s1 + $0x18] sm:$0xff]
      %vm238 = vcmask 261120
      %v240 = vsel %vm238, %v226, 0
      %v243 = vsel %vm238, %v227, 0
      %v246 = vsel %vm238, %v228, 0
      %v249 = vsel %vm238, %v229, 0
      %v252 = vsel %vm238, %v230, 0
      %v255 = vsel %vm238, %v231, 0
      %v258 = vsel %vm238, %v232, 0
      %v261 = vsel %vm238, %v233, 0
      %263 = vmatprep.subr.mxu0 0.0
      %264 = vmatpush1.msra.mxu0 0.0
      %265 = vmatprep.subr.mxu0 0.0
      %266 = vmatpush1.msra.mxu0 0.0
      %267 = vmatprep.subr.mxu0 0.0
      %268 = vmatpush1.msra.mxu0 0.0
      %269 = vmatprep.subr.mxu0 0.0
      %270 = vmatpush1.msra.mxu0 0.0
      %271 = vmatprep.subr.mxu0 0.0
      %272 = vmatpush1.msra.mxu0 0.0
      %273 = vmatprep.subr.mxu0 0.0
      %274 = vmatpush1.msra.mxu0 0.0
      %275 = vmatprep.subr.mxu0 0.0
      %276 = vmatpush1.msra.mxu0 0.0
      %277 = vmatprep.subr.mxu0 0.0
      %278 = vmatpush1.msra.mxu0 0.0
      %279 = vmatprep.subr.mxu0 0.0
      %280 = vmatpush1.msra.mxu0 0.0
      %281 = vmatprep.subr.mxu0 0.0
      %282 = vmatpush1.msra.mxu0 0.0
      %283 = vmatprep.subr.mxu0 0.0
      %284 = vmatpush1.msra.mxu0 0.0
      %285 = vmatprep.subr.mxu0 0.0
      %286 = vmatpush1.msra.mxu0 0.0
      %287 = vmatprep.subr.mxu0 0.0
      %288 = vmatpush1.msra.mxu0 %v237
      %289 = vmatprep.subr.mxu0 0.0
      %290 = vmatpush1.msra.mxu0 %v236
      %291 = vmatprep.subr.mxu0 0.0
      %292 = vmatpush1.msra.mxu0 %v235
      %293 = vmatprep.subr.mxu0 0.0
      %294 = vmatpush1.msra.mxu0 %v234
      %295 = vmatprep.subr.mxu0 0.0
      %296 = vmatpush2.msra.mxu0 0.0
      %297 = vmatprep.subr.mxu0 0.0
      %298 = vmatpush2.msra.mxu0 0.0
      %299 = vmatprep.subr.mxu0 0.0
      %300 = vmatpush2.msra.mxu0 0.0
      %301 = vmatprep.subr.mxu0 0.0
      %302 = vmatpush2.msra.mxu0 0.0
      %303 = vmatprep.subr.mxu0 0.0
      %304 = vmatpush2.msra.mxu0 0.0
      %305 = vmatprep.subr.mxu0 0.0
      %306 = vmatpush2.msra.mxu0 0.0
      %307 = vmatprep.subr.mxu0 0.0
      %308 = vmatpush2.msra.mxu0 0.0
      %309 = vmatprep.subr.mxu0 0.0
      %310 = vmatpush2.msra.mxu0 0.0
      %311 = vmatprep.subr.mxu0 0.0
      %312 = vmatpush2.msra.mxu0 0.0
      %313 = vmatprep.subr.mxu0 0.0
      %314 = vmatpush2.msra.mxu0 0.0
      %315 = vmatprep.subr.mxu0 0.0
      %316 = vmatpush2.msra.mxu0 0.0
      %317 = vmatprep.subr.mxu0 0.0
      %318 = vmatpush2.msra.mxu0 0.0
      %319 = vmatprep.subr.mxu0 0.0
      %320 = vmatpush2.msra.mxu0 0.0
      %321 = vmatprep.subr.mxu0 0.0
      %322 = vmatpush2.msra.mxu0 0.0
      %323 = vmatprep.subr.mxu0 0.0
      %324 = vmatpush2.msra.mxu0 0.0
      %325 = vmatprep.subr.mxu0 0.0
      %326 = vmatpush2.msra.mxu0 0.0
      %327 = vmatprep.mubr.f32.mxu0 0.0
      %328 = vmatmul.mubr.f32.gmra.mxu0 %v240
      %v329 = vpop.f32.mrf.mxu0
      %v330 = vadd.f32 0.0, %v329
      %v331 = vpop.f32.mrf.mxu0
      %332 = vmatprep.mubr.f32.mxu0 0.0
      %333 = vmatmul.mubr.f32.gmra.mxu0 %v243
      %v334 = vpop.f32.mrf.mxu0
      %v335 = vadd.f32 0.0, %v334
      %v336 = vpop.f32.mrf.mxu0
      %337 = vmatprep.mubr.f32.mxu0 0.0
      %338 = vmatmul.mubr.f32.gmra.mxu0 %v246
      %v339 = vpop.f32.mrf.mxu0
      %v340 = vadd.f32 0.0, %v339
      %v341 = vpop.f32.mrf.mxu0
      %342 = vmatprep.mubr.f32.mxu0 0.0
      %343 = vmatmul.mubr.f32.gmra.mxu0 %v249
      %v344 = vpop.f32.mrf.mxu0
      %v345 = vadd.f32 0.0, %v344
      %v346 = vpop.f32.mrf.mxu0
      %347 = vmatprep.mubr.f32.mxu0 0.0
      %348 = vmatmul.mubr.f32.gmra.mxu0 %v252
      %v349 = vpop.f32.mrf.mxu0
      %v350 = vadd.f32 0.0, %v349
      %v351 = vpop.f32.mrf.mxu0
      %352 = vmatprep.mubr.f32.mxu0 0.0
      %353 = vmatmul.mubr.f32.gmra.mxu0 %v255
      %v354 = vpop.f32.mrf.mxu0
      %v355 = vadd.f32 0.0, %v354
      %v356 = vpop.f32.mrf.mxu0
      %357 = vmatprep.mubr.f32.mxu0 0.0
      %358 = vmatmul.mubr.f32.gmra.mxu0 %v258
      %v359 = vpop.f32.mrf.mxu0
      %v360 = vadd.f32 0.0, %v359
      %v361 = vpop.f32.mrf.mxu0
      %362 = vmatprep.mubr.f32.mxu0 0.0
      %363 = vmatmul.mubr.f32.gmra.mxu0 %v261
      %v364 = vpop.f32.mrf.mxu0
      %v365 = vadd.f32 0.0, %v364
      %v366 = vpop.f32.mrf.mxu0
      %367 = vdwg.mxu0
      %368 = vxpose.xlu0.b32.start [1/16] %v330, 128
      %369 = vxpose.xlu0.b32.cont [2/16] %v335, 128
      %370 = vxpose.xlu0.b32.cont [3/16] %v340, 128
      %371 = vxpose.xlu0.b32.cont [4/16] %v345, 128
      %372 = vxpose.xlu0.b32.cont [5/16] %v350, 128
      %373 = vxpose.xlu0.b32.cont [6/16] %v355, 128
      %374 = vxpose.xlu0.b32.cont [7/16] %v360, 128
      %375 = vxpose.xlu0.b32.cont [8/16] %v365, 128
      %376 = vxpose.xlu0.b32.cont [9/16] 0.0, 128
      %377 = vxpose.xlu0.b32.cont [10/16] 0.0, 128
      %378 = vxpose.xlu0.b32.cont [11/16] 0.0, 128
      %379 = vxpose.xlu0.b32.cont [12/16] 0.0, 128
      %380 = vxpose.xlu0.b32.cont [13/16] 0.0, 128
      %381 = vxpose.xlu0.b32.cont [14/16] 0.0, 128
      %382 = vxpose.xlu0.b32.cont [15/16] 0.0, 128
      %383 = vxpose.xlu0.b32.end [16/16] 0.0, 128
      %v384 = vpop.trf.xlu0
      %v385 = vpop.trf.xlu0
      %v386 = vpop.trf.xlu0
      %v387 = vpop.trf.xlu0
      %v388 = vpop.trf.xlu0
      %v389 = vpop.trf.xlu0
      %v390 = vpop.trf.xlu0
      %v391 = vpop.trf.xlu0
      %v392 = vpop.trf.xlu0
      %v393 = vpop.trf.xlu0
      %v394 = vpop.trf.xlu0
      %v395 = vpop.trf.xlu0
      %v396 = vpop.trf.xlu0
      %v397 = vpop.trf.xlu0
      %v398 = vpop.trf.xlu0
      %v399 = vpop.trf.xlu0
      %v400 = vld [vmem:[%s218] sm:$0xf]
      %v401 = vld [vmem:[%s218 + $0x4] sm:$0xf]
      %v402 = vunpack.c.l.bf16 %v400
      %v403 = vunpack.c.l.bf16 %v401
      %405 = vset.pattern.permute.xlu0 96
      %406 = vperm.xlu0 %405, %v330
      %v407 = vpop.permute.xlu0 %406
      %410 = vset.pattern.permute.xlu0 96
      %411 = vperm.xlu0 %410, %v335
      %v412 = vpop.permute.xlu0 %411
      %v414 = vlaneseq
      %v415 = vshrl.u32 %v414, 7
      %v416 = vsub.s32 3, %v415
      %v417 = vrot.slane %v396, %v416
      %v418 = vadd.f32 %v407, %v417
      %v419 = vadd.f32 %v412, %v417
      %vm420 = vcmp.gt.f32.partialorder %v418, 0.0
      %vm421 = vcmp.gt.f32.partialorder %v419, 0.0
      %v422 = vmul.f32 %v418, 0.2
      %v423 = vmul.f32 %v419, 0.2
      %v424 = vsel %vm420, %v418, %v422
      %v425 = vsel %vm421, %v419, %v423
      %v426 = vadd.f32 %v424, %v402
      %v427 = vadd.f32 %v425, %v403
      %vm428 = vcmask 130048
      %v429 = vsel %vm428, %v426, -inf
      %430 = vmax.xlane.f32.xlu0 %v429
      %v431 = vpop.xlane.xlu0 %430
      %v432 = vsel %vm428, %v427, -inf
      %433 = vmax.xlane.f32.xlu0 %v432
      %v434 = vpop.xlane.xlu0 %433
      %v435 = vsub.f32 %v426, %v431
      %v436 = vsub.f32 %v427, %v434
      %v437 = vmul.f32 %v435, 1.442695
      %v438 = vpow.pop %v437
      %v439 = vmul.f32 %v436, 1.442695
      %v440 = vpow.pop %v439
      %v441 = vsel %vm428, %v438, 0.0
      %442 = vadd.xlane.f32.xlu0 %v441
      %v443 = vpop.xlane.xlu0 %442
      %v444 = vsel %vm428, %v440, 0.0
      %445 = vadd.xlane.f32.xlu0 %v444
      %v446 = vpop.xlane.xlu0 %445
      %v447 = vrcp.pop %v443
      %v448 = vrcp.pop %v446
      %v449 = vmul.f32 %v447, 0.33333334
      %v450 = vmul.f32 %v448, 0.33333334
      %v451 = vmul.f32 %v438, %v449
      %v452 = vmul.f32 %v440, %v450
      %453 = vset.pattern.permute.xlu0 97
      %454 = vperm.xlu0 %453, %v330
      %v455 = vpop.permute.xlu0 %454
      %457 = vset.pattern.permute.xlu0 97
      %458 = vperm.xlu0 %457, %v335
      %v459 = vpop.permute.xlu0 %458
      %v461 = vlaneseq
      %v462 = vshrl.u32 %v461, 7
      %v463 = vsub.s32 4, %v462
      %v464 = vrot.slane %v396, %v463
      %v465 = vadd.f32 %v455, %v464
      %v466 = vadd.f32 %v459, %v464
      %vm467 = vcmp.gt.f32.partialorder %v465, 0.0
      %vm468 = vcmp.gt.f32.partialorder %v466, 0.0
      %v469 = vmul.f32 %v465, 0.2
      %v470 = vmul.f32 %v466, 0.2
      %v471 = vsel %vm467, %v465, %v469
      %v472 = vsel %vm468, %v466, %v470
      %v473 = vadd.f32 %v471, %v402
      %v474 = vadd.f32 %v472, %v403
      %v475 = vsel %vm428, %v473, -inf
      %476 = vmax.xlane.f32.xlu0 %v475
      %v477 = vpop.xlane.xlu0 %476
      %v478 = vsel %vm428, %v474, -inf
      %479 = vmax.xlane.f32.xlu0 %v478
      %v480 = vpop.xlane.xlu0 %479
      %v481 = vsub.f32 %v473, %v477
      %v482 = vsub.f32 %v474, %v480
      %v483 = vmul.f32 %v481, 1.442695
      %v484 = vpow.pop %v483
      %v485 = vmul.f32 %v482, 1.442695
      %v486 = vpow.pop %v485
      %v487 = vsel %vm428, %v484, 0.0
      %488 = vadd.xlane.f32.xlu0 %v487
      %v489 = vpop.xlane.xlu0 %488
      %v490 = vsel %vm428, %v486, 0.0
      %491 = vadd.xlane.f32.xlu0 %v490
      %v492 = vpop.xlane.xlu0 %491
      %v493 = vrcp.pop %v489
      %v494 = vrcp.pop %v492
      %v495 = vmul.f32 %v493, 0.33333334
      %v496 = vmul.f32 %v494, 0.33333334
      %v497 = vmul.f32 %v484, %v495
      %v498 = vmul.f32 %v486, %v496
      %499 = vrot.lane.b32.xlu0 %v330, 96
      %v500 = vpop.permute.xlu0 %499
      %501 = vrot.lane.b32.xlu0 %v335, 96
      %v502 = vpop.permute.xlu0 %501
      %v506 = vsel %vm428, %v497, 0
      %v509 = vsel %vm428, %v498, 0
      %511 = vmatprep.subr.mxu0 0.0
      %512 = vmatpush1.msra.mxu0 0.0
      %513 = vmatprep.subr.mxu0 0.0
      %514 = vmatpush1.msra.mxu0 0.0
      %515 = vmatprep.subr.mxu0 0.0
      %516 = vmatpush1.msra.mxu0 0.0
      %517 = vmatprep.subr.mxu0 0.0
      %518 = vmatpush1.msra.mxu0 0.0
      %519 = vmatprep.subr.mxu0 0.0
      %520 = vmatpush1.msra.mxu0 0.0
      %521 = vmatprep.subr.mxu0 0.0
      %522 = vmatpush1.msra.mxu0 0.0
      %523 = vmatprep.subr.mxu0 0.0
      %524 = vmatpush1.msra.mxu0 0.0
      %525 = vmatprep.subr.mxu0 0.0
      %526 = vmatpush1.msra.mxu0 0.0
      %527 = vmatprep.subr.mxu0 0.0
      %528 = vmatpush1.msra.mxu0 0.0
      %529 = vmatprep.subr.mxu0 0.0
      %530 = vmatpush1.msra.mxu0 0.0
      %531 = vmatprep.subr.mxu0 0.0
      %532 = vmatpush1.msra.mxu0 0.0
      %533 = vmatprep.subr.mxu0 0.0
      %534 = vmatpush1.msra.mxu0 0.0
      %535 = vmatprep.subr.mxu0 0.0
      %536 = vmatpush1.msra.mxu0 0.0
      %537 = vmatprep.subr.mxu0 0.0
      %538 = vmatpush1.msra.mxu0 0.0
      %539 = vmatprep.subr.mxu0 0.0
      %540 = vmatpush1.msra.mxu0 %v502
      %541 = vmatprep.subr.mxu0 0.0
      %542 = vmatpush1.msra.mxu0 %v500
      %543 = vmatprep.subr.mxu0 0.0
      %544 = vmatpush2.msra.mxu0 0.0
      %545 = vmatprep.subr.mxu0 0.0
      %546 = vmatpush2.msra.mxu0 0.0
      %547 = vmatprep.subr.mxu0 0.0
      %548 = vmatpush2.msra.mxu0 0.0
      %549 = vmatprep.subr.mxu0 0.0
      %550 = vmatpush2.msra.mxu0 0.0
      %551 = vmatprep.subr.mxu0 0.0
      %552 = vmatpush2.msra.mxu0 0.0
      %553 = vmatprep.subr.mxu0 0.0
      %554 = vmatpush2.msra.mxu0 0.0
      %555 = vmatprep.subr.mxu0 0.0
      %556 = vmatpush2.msra.mxu0 0.0
      %557 = vmatprep.subr.mxu0 0.0
      %558 = vmatpush2.msra.mxu0 0.0
      %559 = vmatprep.subr.mxu0 0.0
      %560 = vmatpush2.msra.mxu0 0.0
      %561 = vmatprep.subr.mxu0 0.0
      %562 = vmatpush2.msra.mxu0 0.0
      %563 = vmatprep.subr.mxu0 0.0
      %564 = vmatpush2.msra.mxu0 0.0
      %565 = vmatprep.subr.mxu0 0.0
      %566 = vmatpush2.msra.mxu0 0.0
      %567 = vmatprep.subr.mxu0 0.0
      %568 = vmatpush2.msra.mxu0 0.0
      %569 = vmatprep.subr.mxu0 0.0
      %570 = vmatpush2.msra.mxu0 0.0
      %571 = vmatprep.subr.mxu0 0.0
      %572 = vmatpush2.msra.mxu0 0.0
      %573 = vmatprep.subr.mxu0 0.0
      %574 = vmatpush2.msra.mxu0 0.0
      %575 = vmatprep.mubr.f32.mxu0 0.0
      %576 = vmatmul.mubr.f32.gmra.mxu0 %v506
      %v577 = vpop.f32.mrf.mxu0
      %v578 = vadd.f32 0.0, %v577
      %v579 = vpop.f32.mrf.mxu0
      %580 = vmatprep.mubr.f32.mxu0 0.0
      %581 = vmatmul.mubr.f32.gmra.mxu0 %v509
      %v582 = vpop.f32.mrf.mxu0
      %v583 = vadd.f32 0.0, %v582
      %v584 = vpop.f32.mrf.mxu0
      %585 = vdwg.mxu0
      %v587 = vsel %vm428, %v451, 0
      %v590 = vsel %vm428, %v452, 0
      %592 = vmatprep.subr.mxu0 0.0
      %593 = vmatpush1.msra.mxu0 0.0
      %594 = vmatprep.subr.mxu0 0.0
      %595 = vmatpush1.msra.mxu0 0.0
      %596 = vmatprep.subr.mxu0 0.0
      %597 = vmatpush1.msra.mxu0 0.0
      %598 = vmatprep.subr.mxu0 0.0
      %599 = vmatpush1.msra.mxu0 0.0
      %600 = vmatprep.subr.mxu0 0.0
      %601 = vmatpush1.msra.mxu0 0.0
      %602 = vmatprep.subr.mxu0 0.0
      %603 = vmatpush1.msra.mxu0 0.0
      %604 = vmatprep.subr.mxu0 0.0
      %605 = vmatpush1.msra.mxu0 0.0
      %606 = vmatprep.subr.mxu0 0.0
      %607 = vmatpush1.msra.mxu0 0.0
      %608 = vmatprep.subr.mxu0 0.0
      %609 = vmatpush1.msra.mxu0 0.0
      %610 = vmatprep.subr.mxu0 0.0
      %611 = vmatpush1.msra.mxu0 0.0
      %612 = vmatprep.subr.mxu0 0.0
      %613 = vmatpush1.msra.mxu0 0.0
      %614 = vmatprep.subr.mxu0 0.0
      %615 = vmatpush1.msra.mxu0 0.0
      %616 = vmatprep.subr.mxu0 0.0
      %617 = vmatpush1.msra.mxu0 0.0
      %618 = vmatprep.subr.mxu0 0.0
      %619 = vmatpush1.msra.mxu0 0.0
      %620 = vmatprep.subr.mxu0 0.0
      %621 = vmatpush1.msra.mxu0 %v335
      %622 = vmatprep.subr.mxu0 0.0
      %623 = vmatpush1.msra.mxu0 %v330
      %624 = vmatprep.subr.mxu0 0.0
      %625 = vmatpush2.msra.mxu0 0.0
      %626 = vmatprep.subr.mxu0 0.0
      %627 = vmatpush2.msra.mxu0 0.0
      %628 = vmatprep.subr.mxu0 0.0
      %629 = vmatpush2.msra.mxu0 0.0
      %630 = vmatprep.subr.mxu0 0.0
      %631 = vmatpush2.msra.mxu0 0.0
      %632 = vmatprep.subr.mxu0 0.0
      %633 = vmatpush2.msra.mxu0 0.0
      %634 = vmatprep.subr.mxu0 0.0
      %635 = vmatpush2.msra.mxu0 0.0
      %636 = vmatprep.subr.mxu0 0.0
      %637 = vmatpush2.msra.mxu0 0.0
      %638 = vmatprep.subr.mxu0 0.0
      %639 = vmatpush2.msra.mxu0 0.0
      %640 = vmatprep.subr.mxu0 0.0
      %641 = vmatpush2.msra.mxu0 0.0
      %642 = vmatprep.subr.mxu0 0.0
      %643 = vmatpush2.msra.mxu0 0.0
      %644 = vmatprep.subr.mxu0 0.0
      %645 = vmatpush2.msra.mxu0 0.0
      %646 = vmatprep.subr.mxu0 0.0
      %647 = vmatpush2.msra.mxu0 0.0
      %648 = vmatprep.subr.mxu0 0.0
      %649 = vmatpush2.msra.mxu0 0.0
      %650 = vmatprep.subr.mxu0 0.0
      %651 = vmatpush2.msra.mxu0 0.0
      %652 = vmatprep.subr.mxu0 0.0
      %653 = vmatpush2.msra.mxu0 0.0
      %654 = vmatprep.subr.mxu0 0.0
      %655 = vmatpush2.msra.mxu0 0.0
      %656 = vmatprep.mubr.f32.mxu0 0.0
      %657 = vmatmul.mubr.f32.gmra.mxu0 %v587
      %v658 = vpop.f32.mrf.mxu0
      %v659 = vadd.f32 %v578, %v658
      %v660 = vpop.f32.mrf.mxu0
      %661 = vmatprep.mubr.f32.mxu0 0.0
      %662 = vmatmul.mubr.f32.gmra.mxu0 %v590
      %v663 = vpop.f32.mrf.mxu0
      %v664 = vadd.f32 %v583, %v663
      %v665 = vpop.f32.mrf.mxu0
      %666 = vdwg.mxu0
      %667 = vset.pattern.permute.xlu0 98
      %668 = vperm.xlu0 %667, %v330
      %v669 = vpop.permute.xlu0 %668
      %671 = vset.pattern.permute.xlu0 98
      %672 = vperm.xlu0 %671, %v335
      %v673 = vpop.permute.xlu0 %672
      %v675 = vlaneseq
      %v676 = vshrl.u32 %v675, 7
      %v677 = vsub.s32 5, %v676
      %v678 = vrot.slane %v396, %v677
      %v679 = vadd.f32 %v669, %v678
      %v680 = vadd.f32 %v673, %v678
      %vm681 = vcmp.gt.f32.partialorder %v679, 0.0
      %vm682 = vcmp.gt.f32.partialorder %v680, 0.0
      %v683 = vmul.f32 %v679, 0.2
      %v684 = vmul.f32 %v680, 0.2
      %v685 = vsel %vm681, %v679, %v683
      %v686 = vsel %vm682, %v680, %v684
      %v687 = vadd.f32 %v685, %v402
      %v688 = vadd.f32 %v686, %v403
      %v689 = vsel %vm428, %v687, -inf
      %690 = vmax.xlane.f32.xlu0 %v689
      %v691 = vpop.xlane.xlu0 %690
      %v692 = vsel %vm428, %v688, -inf
      %693 = vmax.xlane.f32.xlu0 %v692
      %v694 = vpop.xlane.xlu0 %693
      %v695 = vsub.f32 %v687, %v691
      %v696 = vsub.f32 %v688, %v694
      %v697 = vmul.f32 %v695, 1.442695
      %v698 = vpow.pop %v697
      %v699 = vmul.f32 %v696, 1.442695
      %v700 = vpow.pop %v699
      %v701 = vsel %vm428, %v698, 0.0
      %702 = vadd.xlane.f32.xlu0 %v701
      %v703 = vpop.xlane.xlu0 %702
      %v704 = vsel %vm428, %v700, 0.0
      %705 = vadd.xlane.f32.xlu0 %v704
      %v706 = vpop.xlane.xlu0 %705
      %v707 = vrcp.pop %v703
      %v708 = vrcp.pop %v706
      %v709 = vmul.f32 %v707, 0.33333334
      %v710 = vmul.f32 %v708, 0.33333334
      %v711 = vmul.f32 %v698, %v709
      %v712 = vmul.f32 %v700, %v710
      %713 = vrot.lane.b32.xlu0 %v330, 64
      %v714 = vpop.permute.xlu0 %713
      %715 = vrot.lane.b32.xlu0 %v335, 64
      %v716 = vpop.permute.xlu0 %715
      %v720 = vsel %vm428, %v711, 0
      %v723 = vsel %vm428, %v712, 0
      %725 = vmatprep.subr.mxu0 0.0
      %726 = vmatpush1.msra.mxu0 0.0
      %727 = vmatprep.subr.mxu0 0.0
      %728 = vmatpush1.msra.mxu0 0.0
      %729 = vmatprep.subr.mxu0 0.0
      %730 = vmatpush1.msra.mxu0 0.0
      %731 = vmatprep.subr.mxu0 0.0
      %732 = vmatpush1.msra.mxu0 0.0
      %733 = vmatprep.subr.mxu0 0.0
      %734 = vmatpush1.msra.mxu0 0.0
      %735 = vmatprep.subr.mxu0 0.0
      %736 = vmatpush1.msra.mxu0 0.0
      %737 = vmatprep.subr.mxu0 0.0
      %738 = vmatpush1.msra.mxu0 0.0
      %739 = vmatprep.subr.mxu0 0.0
      %740 = vmatpush1.msra.mxu0 0.0
      %741 = vmatprep.subr.mxu0 0.0
      %742 = vmatpush1.msra.mxu0 0.0
      %743 = vmatprep.subr.mxu0 0.0
      %744 = vmatpush1.msra.mxu0 0.0
      %745 = vmatprep.subr.mxu0 0.0
      %746 = vmatpush1.msra.mxu0 0.0
      %747 = vmatprep.subr.mxu0 0.0
      %748 = vmatpush1.msra.mxu0 0.0
      %749 = vmatprep.subr.mxu0 0.0
      %750 = vmatpush1.msra.mxu0 0.0
      %751 = vmatprep.subr.mxu0 0.0
      %752 = vmatpush1.msra.mxu0 0.0
      %753 = vmatprep.subr.mxu0 0.0
      %754 = vmatpush1.msra.mxu0 %v716
      %755 = vmatprep.subr.mxu0 0.0
      %756 = vmatpush1.msra.mxu0 %v714
      %757 = vmatprep.subr.mxu0 0.0
      %758 = vmatpush2.msra.mxu0 0.0
      %759 = vmatprep.subr.mxu0 0.0
      %760 = vmatpush2.msra.mxu0 0.0
      %761 = vmatprep.subr.mxu0 0.0
      %762 = vmatpush2.msra.mxu0 0.0
      %763 = vmatprep.subr.mxu0 0.0
      %764 = vmatpush2.msra.mxu0 0.0
      %765 = vmatprep.subr.mxu0 0.0
      %766 = vmatpush2.msra.mxu0 0.0
      %767 = vmatprep.subr.mxu0 0.0
      %768 = vmatpush2.msra.mxu0 0.0
      %769 = vmatprep.subr.mxu0 0.0
      %770 = vmatpush2.msra.mxu0 0.0
      %771 = vmatprep.subr.mxu0 0.0
      %772 = vmatpush2.msra.mxu0 0.0
      %773 = vmatprep.subr.mxu0 0.0
      %774 = vmatpush2.msra.mxu0 0.0
      %775 = vmatprep.subr.mxu0 0.0
      %776 = vmatpush2.msra.mxu0 0.0
      %777 = vmatprep.subr.mxu0 0.0
      %778 = vmatpush2.msra.mxu0 0.0
      %779 = vmatprep.subr.mxu0 0.0
      %780 = vmatpush2.msra.mxu0 0.0
      %781 = vmatprep.subr.mxu0 0.0
      %782 = vmatpush2.msra.mxu0 0.0
      %783 = vmatprep.subr.mxu0 0.0
      %784 = vmatpush2.msra.mxu0 0.0
      %785 = vmatprep.subr.mxu0 0.0
      %786 = vmatpush2.msra.mxu0 0.0
      %787 = vmatprep.subr.mxu0 0.0
      %788 = vmatpush2.msra.mxu0 0.0
      %789 = vmatprep.mubr.f32.mxu0 0.0
      %790 = vmatmul.mubr.f32.gmra.mxu0 %v720
      %v791 = vpop.f32.mrf.mxu0
      %v792 = vadd.f32 0.0, %v791
      %v793 = vpop.f32.mrf.mxu0
      %794 = vmatprep.mubr.f32.mxu0 0.0
      %795 = vmatmul.mubr.f32.gmra.mxu0 %v723
      %v796 = vpop.f32.mrf.mxu0
      %v797 = vadd.f32 0.0, %v796
      %v798 = vpop.f32.mrf.mxu0
      %799 = vdwg.mxu0
      %v800 = vadd.f32 %v659, %v792
      %v801 = vadd.f32 %v664, %v797
      %s802 = scalar_lea.vmem %s218, 8
      %v803 = vld [vmem:[%s802] sm:$0xf]
      %v804 = vld [vmem:[%s802 + $0x4] sm:$0xf]
      %v805 = vunpack.c.l.bf16 %v803
      %v806 = vunpack.c.l.bf16 %v804
      %808 = vset.pattern.permute.xlu0 96
      %809 = vperm.xlu0 %808, %v340
      %v810 = vpop.permute.xlu0 %809
      %813 = vset.pattern.permute.xlu0 96
      %814 = vperm.xlu0 %813, %v345
      %v815 = vpop.permute.xlu0 %814
      %v817 = vadd.f32 %v810, %v417
      %v818 = vadd.f32 %v815, %v417
      %vm819 = vcmp.gt.f32.partialorder %v817, 0.0
      %vm820 = vcmp.gt.f32.partialorder %v818, 0.0
      %v821 = vmul.f32 %v817, 0.2
      %v822 = vmul.f32 %v818, 0.2
      %v823 = vsel %vm819, %v817, %v821
      %v824 = vsel %vm820, %v818, %v822
      %827 = vrot.lane.b32.xlu0 %v805, 16
      %v828 = vpop.permute.xlu0 %827
      %829 = vrot.lane.b32.xlu0 %v806, 16
      %v830 = vpop.permute.xlu0 %829
      %v833 = vadd.f32 %v823, %v828
      %v834 = vadd.f32 %v824, %v830
      %vm835 = vcmask 261248
      %v836 = vsel %vm835, %v833, -inf
      %837 = vmax.xlane.f32.xlu0 %v836
      %v838 = vpop.xlane.xlu0 %837
      %v839 = vsel %vm835, %v834, -inf
      %840 = vmax.xlane.f32.xlu0 %v839
      %v841 = vpop.xlane.xlu0 %840
      %v842 = vsub.f32 %v833, %v838
      %v843 = vsub.f32 %v834, %v841
      %v844 = vmul.f32 %v842, 1.442695
      %v845 = vpow.pop %v844
      %v846 = vmul.f32 %v843, 1.442695
      %v847 = vpow.pop %v846
      %850 = vrot.lane.b32.xlu0 %v845, 112
      %v851 = vpop.permute.xlu0 %850
      %852 = vrot.lane.b32.xlu0 %v847, 112
      %v853 = vpop.permute.xlu0 %852
      %v856 = vsel %vm428, %v851, 0.0
      %857 = vadd.xlane.f32.xlu0 %v856
      %v858 = vpop.xlane.xlu0 %857
      %v859 = vsel %vm428, %v853, 0.0
      %860 = vadd.xlane.f32.xlu0 %v859
      %v861 = vpop.xlane.xlu0 %860
      %v862 = vrcp.pop %v858
      %v863 = vrcp.pop %v861
      %v864 = vmul.f32 %v862, 0.33333334
      %v865 = vmul.f32 %v863, 0.33333334
      %v866 = vmul.f32 %v845, %v864
      %v867 = vmul.f32 %v847, %v865
      %868 = vset.pattern.permute.xlu0 97
      %869 = vperm.xlu0 %868, %v340
      %v870 = vpop.permute.xlu0 %869
      %872 = vset.pattern.permute.xlu0 97
      %873 = vperm.xlu0 %872, %v345
      %v874 = vpop.permute.xlu0 %873
      %v876 = vadd.f32 %v870, %v464
      %v877 = vadd.f32 %v874, %v464
      %vm878 = vcmp.gt.f32.partialorder %v876, 0.0
      %vm879 = vcmp.gt.f32.partialorder %v877, 0.0
      %v880 = vmul.f32 %v876, 0.2
      %v881 = vmul.f32 %v877, 0.2
      %v882 = vsel %vm878, %v876, %v880
      %v883 = vsel %vm879, %v877, %v881
      %v884 = vadd.f32 %v882, %v828
      %v885 = vadd.f32 %v883, %v830
      %v886 = vsel %vm835, %v884, -inf
      %887 = vmax.xlane.f32.xlu0 %v886
      %v888 = vpop.xlane.xlu0 %887
      %v889 = vsel %vm835, %v885, -inf
      %890 = vmax.xlane.f32.xlu0 %v889
      %v891 = vpop.xlane.xlu0 %890
      %v892 = vsub.f32 %v884, %v888
      %v893 = vsub.f32 %v885, %v891
      %v894 = vmul.f32 %v892, 1.442695
      %v895 = vpow.pop %v894
      %v896 = vmul.f32 %v893, 1.442695
      %v897 = vpow.pop %v896
      %900 = vrot.lane.b32.xlu0 %v895, 112
      %v901 = vpop.permute.xlu0 %900
      %902 = vrot.lane.b32.xlu0 %v897, 112
      %v903 = vpop.permute.xlu0 %902
      %v906 = vsel %vm428, %v901, 0.0
      %907 = vadd.xlane.f32.xlu0 %v906
      %v908 = vpop.xlane.xlu0 %907
      %v909 = vsel %vm428, %v903, 0.0
      %910 = vadd.xlane.f32.xlu0 %v909
      %v911 = vpop.xlane.xlu0 %910
      %v912 = vrcp.pop %v908
      %v913 = vrcp.pop %v911
      %v914 = vmul.f32 %v912, 0.33333334
      %v915 = vmul.f32 %v913, 0.33333334
      %v916 = vmul.f32 %v895, %v914
      %v917 = vmul.f32 %v897, %v915
      %920 = vrot.lane.b32.xlu0 %v916, 112
      %v921 = vpop.permute.xlu0 %920
      %922 = vrot.lane.b32.xlu0 %v917, 112
      %v923 = vpop.permute.xlu0 %922
      %924 = vrot.lane.b32.xlu0 %v340, 96
      %v925 = vpop.permute.xlu0 %924
      %926 = vrot.lane.b32.xlu0 %v345, 96
      %v927 = vpop.permute.xlu0 %926
      %v930 = vsel %vm428, %v921, 0
      %v932 = vsel %vm428, %v923, 0
      %934 = vmatprep.subr.mxu0 0.0
      %935 = vmatpush1.msra.mxu0 0.0
      %936 = vmatprep.subr.mxu0 0.0
      %937 = vmatpush1.msra.mxu0 0.0
      %938 = vmatprep.subr.mxu0 0.0
      %939 = vmatpush1.msra.mxu0 0.0
      %940 = vmatprep.subr.mxu0 0.0
      %941 = vmatpush1.msra.mxu0 0.0
      %942 = vmatprep.subr.mxu0 0.0
      %943 = vmatpush1.msra.mxu0 0.0
      %944 = vmatprep.subr.mxu0 0.0
      %945 = vmatpush1.msra.mxu0 0.0
      %946 = vmatprep.subr.mxu0 0.0
      %947 = vmatpush1.msra.mxu0 0.0
      %948 = vmatprep.subr.mxu0 0.0
      %949 = vmatpush1.msra.mxu0 0.0
      %950 = vmatprep.subr.mxu0 0.0
      %951 = vmatpush1.msra.mxu0 0.0
      %952 = vmatprep.subr.mxu0 0.0
      %953 = vmatpush1.msra.mxu0 0.0
      %954 = vmatprep.subr.mxu0 0.0
      %955 = vmatpush1.msra.mxu0 0.0
      %956 = vmatprep.subr.mxu0 0.0
      %957 = vmatpush1.msra.mxu0 0.0
      %958 = vmatprep.subr.mxu0 0.0
      %959 = vmatpush1.msra.mxu0 0.0
      %960 = vmatprep.subr.mxu0 0.0
      %961 = vmatpush1.msra.mxu0 0.0
      %962 = vmatprep.subr.mxu0 0.0
      %963 = vmatpush1.msra.mxu0 %v927
      %964 = vmatprep.subr.mxu0 0.0
      %965 = vmatpush1.msra.mxu0 %v925
      %966 = vmatprep.subr.mxu0 0.0
      %967 = vmatpush2.msra.mxu0 0.0
      %968 = vmatprep.subr.mxu0 0.0
      %969 = vmatpush2.msra.mxu0 0.0
      %970 = vmatprep.subr.mxu0 0.0
      %971 = vmatpush2.msra.mxu0 0.0
      %972 = vmatprep.subr.mxu0 0.0
      %973 = vmatpush2.msra.mxu0 0.0
      %974 = vmatprep.subr.mxu0 0.0
      %975 = vmatpush2.msra.mxu0 0.0
      %976 = vmatprep.subr.mxu0 0.0
      %977 = vmatpush2.msra.mxu0 0.0
      %978 = vmatprep.subr.mxu0 0.0
      %979 = vmatpush2.msra.mxu0 0.0
      %980 = vmatprep.subr.mxu0 0.0
      %981 = vmatpush2.msra.mxu0 0.0
      %982 = vmatprep.subr.mxu0 0.0
      %983 = vmatpush2.msra.mxu0 0.0
      %984 = vmatprep.subr.mxu0 0.0
      %985 = vmatpush2.msra.mxu0 0.0
      %986 = vmatprep.subr.mxu0 0.0
      %987 = vmatpush2.msra.mxu0 0.0
      %988 = vmatprep.subr.mxu0 0.0
      %989 = vmatpush2.msra.mxu0 0.0
      %990 = vmatprep.subr.mxu0 0.0
      %991 = vmatpush2.msra.mxu0 0.0
      %992 = vmatprep.subr.mxu0 0.0
      %993 = vmatpush2.msra.mxu0 0.0
      %994 = vmatprep.subr.mxu0 0.0
      %995 = vmatpush2.msra.mxu0 0.0
      %996 = vmatprep.subr.mxu0 0.0
      %997 = vmatpush2.msra.mxu0 0.0
      %998 = vmatprep.mubr.f32.mxu0 0.0
      %999 = vmatmul.mubr.f32.gmra.mxu0 %v930
      %v1000 = vpop.f32.mrf.mxu0
      %v1001 = vadd.f32 0.0, %v1000
      %v1002 = vpop.f32.mrf.mxu0
      %1003 = vmatprep.mubr.f32.mxu0 0.0
      %1004 = vmatmul.mubr.f32.gmra.mxu0 %v932
      %v1005 = vpop.f32.mrf.mxu0
      %v1006 = vadd.f32 0.0, %v1005
      %v1007 = vpop.f32.mrf.mxu0
      %1008 = vdwg.mxu0
      %1011 = vrot.lane.b32.xlu0 %v866, 112
      %v1012 = vpop.permute.xlu0 %1011
      %1013 = vrot.lane.b32.xlu0 %v867, 112
      %v1014 = vpop.permute.xlu0 %1013
      %v1015 = vsel %vm428, %v1012, 0
      %v1017 = vsel %vm428, %v1014, 0
      %1019 = vmatprep.subr.mxu0 0.0
      %1020 = vmatpush1.msra.mxu0 0.0
      %1021 = vmatprep.subr.mxu0 0.0
      %1022 = vmatpush1.msra.mxu0 0.0
      %1023 = vmatprep.subr.mxu0 0.0
      %1024 = vmatpush1.msra.mxu0 0.0
      %1025 = vmatprep.subr.mxu0 0.0
      %1026 = vmatpush1.msra.mxu0 0.0
      %1027 = vmatprep.subr.mxu0 0.0
      %1028 = vmatpush1.msra.mxu0 0.0
      %1029 = vmatprep.subr.mxu0 0.0
      %1030 = vmatpush1.msra.mxu0 0.0
      %1031 = vmatprep.subr.mxu0 0.0
      %1032 = vmatpush1.msra.mxu0 0.0
      %1033 = vmatprep.subr.mxu0 0.0
      %1034 = vmatpush1.msra.mxu0 0.0
      %1035 = vmatprep.subr.mxu0 0.0
      %1036 = vmatpush1.msra.mxu0 0.0
      %1037 = vmatprep.subr.mxu0 0.0
      %1038 = vmatpush1.msra.mxu0 0.0
      %1039 = vmatprep.subr.mxu0 0.0
      %1040 = vmatpush1.msra.mxu0 0.0
      %1041 = vmatprep.subr.mxu0 0.0
      %1042 = vmatpush1.msra.mxu0 0.0
      %1043 = vmatprep.subr.mxu0 0.0
      %1044 = vmatpush1.msra.mxu0 0.0
      %1045 = vmatprep.subr.mxu0 0.0
      %1046 = vmatpush1.msra.mxu0 0.0
      %1047 = vmatprep.subr.mxu0 0.0
      %1048 = vmatpush1.msra.mxu0 %v345
      %1049 = vmatprep.subr.mxu0 0.0
      %1050 = vmatpush1.msra.mxu0 %v340
      %1051 = vmatprep.subr.mxu0 0.0
      %1052 = vmatpush2.msra.mxu0 0.0
      %1053 = vmatprep.subr.mxu0 0.0
      %1054 = vmatpush2.msra.mxu0 0.0
      %1055 = vmatprep.subr.mxu0 0.0
      %1056 = vmatpush2.msra.mxu0 0.0
      %1057 = vmatprep.subr.mxu0 0.0
      %1058 = vmatpush2.msra.mxu0 0.0
      %1059 = vmatprep.subr.mxu0 0.0
      %1060 = vmatpush2.msra.mxu0 0.0
      %1061 = vmatprep.subr.mxu0 0.0
      %1062 = vmatpush2.msra.mxu0 0.0
      %1063 = vmatprep.subr.mxu0 0.0
      %1064 = vmatpush2.msra.mxu0 0.0
      %1065 = vmatprep.subr.mxu0 0.0
      %1066 = vmatpush2.msra.mxu0 0.0
      %1067 = vmatprep.subr.mxu0 0.0
      %1068 = vmatpush2.msra.mxu0 0.0
      %1069 = vmatprep.subr.mxu0 0.0
      %1070 = vmatpush2.msra.mxu0 0.0
      %1071 = vmatprep.subr.mxu0 0.0
      %1072 = vmatpush2.msra.mxu0 0.0
      %1073 = vmatprep.subr.mxu0 0.0
      %1074 = vmatpush2.msra.mxu0 0.0
      %1075 = vmatprep.subr.mxu0 0.0
      %1076 = vmatpush2.msra.mxu0 0.0
      %1077 = vmatprep.subr.mxu0 0.0
      %1078 = vmatpush2.msra.mxu0 0.0
      %1079 = vmatprep.subr.mxu0 0.0
      %1080 = vmatpush2.msra.mxu0 0.0
      %1081 = vmatprep.subr.mxu0 0.0
      %1082 = vmatpush2.msra.mxu0 0.0
      %1083 = vmatprep.mubr.f32.mxu0 0.0
      %1084 = vmatmul.mubr.f32.gmra.mxu0 %v1015
      %v1085 = vpop.f32.mrf.mxu0
      %v1086 = vadd.f32 %v1001, %v1085
      %v1087 = vpop.f32.mrf.mxu0
      %1088 = vmatprep.mubr.f32.mxu0 0.0
      %1089 = vmatmul.mubr.f32.gmra.mxu0 %v1017
      %v1090 = vpop.f32.mrf.mxu0
      %v1091 = vadd.f32 %v1006, %v1090
      %v1092 = vpop.f32.mrf.mxu0
      %1093 = vdwg.mxu0
      %1094 = vset.pattern.permute.xlu0 98
      %1095 = vperm.xlu0 %1094, %v340
      %v1096 = vpop.permute.xlu0 %1095
      %1098 = vset.pattern.permute.xlu0 98
      %1099 = vperm.xlu0 %1098, %v345
      %v1100 = vpop.permute.xlu0 %1099
      %v1102 = vadd.f32 %v1096, %v678
      %v1103 = vadd.f32 %v1100, %v678
      %vm1104 = vcmp.gt.f32.partialorder %v1102, 0.0
      %vm1105 = vcmp.gt.f32.partialorder %v1103, 0.0
      %v1106 = vmul.f32 %v1102, 0.2
      %v1107 = vmul.f32 %v1103, 0.2
      %v1108 = vsel %vm1104, %v1102, %v1106
      %v1109 = vsel %vm1105, %v1103, %v1107
      %v1110 = vadd.f32 %v1108, %v828
      %v1111 = vadd.f32 %v1109, %v830
      %v1112 = vsel %vm835, %v1110, -inf
      %1113 = vmax.xlane.f32.xlu0 %v1112
      %v1114 = vpop.xlane.xlu0 %1113
      %v1115 = vsel %vm835, %v1111, -inf
      %1116 = vmax.xlane.f32.xlu0 %v1115
      %v1117 = vpop.xlane.xlu0 %1116
      %v1118 = vsub.f32 %v1110, %v1114
      %v1119 = vsub.f32 %v1111, %v1117
      %v1120 = vmul.f32 %v1118, 1.442695
      %v1121 = vpow.pop %v1120
      %v1122 = vmul.f32 %v1119, 1.442695
      %v1123 = vpow.pop %v1122
      %1126 = vrot.lane.b32.xlu0 %v1121, 112
      %v1127 = vpop.permute.xlu0 %1126
      %1128 = vrot.lane.b32.xlu0 %v1123, 112
      %v1129 = vpop.permute.xlu0 %1128
      %v1132 = vsel %vm428, %v1127, 0.0
      %1133 = vadd.xlane.f32.xlu0 %v1132
      %v1134 = vpop.xlane.xlu0 %1133
      %v1135 = vsel %vm428, %v1129, 0.0
      %1136 = vadd.xlane.f32.xlu0 %v1135
      %v1137 = vpop.xlane.xlu0 %1136
      %v1138 = vrcp.pop %v1134
      %v1139 = vrcp.pop %v1137
      %v1140 = vmul.f32 %v1138, 0.33333334
      %v1141 = vmul.f32 %v1139, 0.33333334
      %v1142 = vmul.f32 %v1121, %v1140
      %v1143 = vmul.f32 %v1123, %v1141
      %1146 = vrot.lane.b32.xlu0 %v1142, 112
      %v1147 = vpop.permute.xlu0 %1146
      %1148 = vrot.lane.b32.xlu0 %v1143, 112
      %v1149 = vpop.permute.xlu0 %1148
      %1150 = vrot.lane.b32.xlu0 %v340, 64
      %v1151 = vpop.permute.xlu0 %1150
      %1152 = vrot.lane.b32.xlu0 %v345, 64
      %v1153 = vpop.permute.xlu0 %1152
      %v1156 = vsel %vm428, %v1147, 0
      %v1158 = vsel %vm428, %v1149, 0
      %1160 = vmatprep.subr.mxu0 0.0
      %1161 = vmatpush1.msra.mxu0 0.0
      %1162 = vmatprep.subr.mxu0 0.0
      %1163 = vmatpush1.msra.mxu0 0.0
      %1164 = vmatprep.subr.mxu0 0.0
      %1165 = vmatpush1.msra.mxu0 0.0
      %1166 = vmatprep.subr.mxu0 0.0
      %1167 = vmatpush1.msra.mxu0 0.0
      %1168 = vmatprep.subr.mxu0 0.0
      %1169 = vmatpush1.msra.mxu0 0.0
      %1170 = vmatprep.subr.mxu0 0.0
      %1171 = vmatpush1.msra.mxu0 0.0
      %1172 = vmatprep.subr.mxu0 0.0
      %1173 = vmatpush1.msra.mxu0 0.0
      %1174 = vmatprep.subr.mxu0 0.0
      %1175 = vmatpush1.msra.mxu0 0.0
      %1176 = vmatprep.subr.mxu0 0.0
      %1177 = vmatpush1.msra.mxu0 0.0
      %1178 = vmatprep.subr.mxu0 0.0
      %1179 = vmatpush1.msra.mxu0 0.0
      %1180 = vmatprep.subr.mxu0 0.0
      %1181 = vmatpush1.msra.mxu0 0.0
      %1182 = vmatprep.subr.mxu0 0.0
      %1183 = vmatpush1.msra.mxu0 0.0
      %1184 = vmatprep.subr.mxu0 0.0
      %1185 = vmatpush1.msra.mxu0 0.0
      %1186 = vmatprep.subr.mxu0 0.0
      %1187 = vmatpush1.msra.mxu0 0.0
      %1188 = vmatprep.subr.mxu0 0.0
      %1189 = vmatpush1.msra.mxu0 %v1153
      %1190 = vmatprep.subr.mxu0 0.0
      %1191 = vmatpush1.msra.mxu0 %v1151
      %1192 = vmatprep.subr.mxu0 0.0
      %1193 = vmatpush2.msra.mxu0 0.0
      %1194 = vmatprep.subr.mxu0 0.0
      %1195 = vmatpush2.msra.mxu0 0.0
      %1196 = vmatprep.subr.mxu0 0.0
      %1197 = vmatpush2.msra.mxu0 0.0
      %1198 = vmatprep.subr.mxu0 0.0
      %1199 = vmatpush2.msra.mxu0 0.0
      %1200 = vmatprep.subr.mxu0 0.0
      %1201 = vmatpush2.msra.mxu0 0.0
      %1202 = vmatprep.subr.mxu0 0.0
      %1203 = vmatpush2.msra.mxu0 0.0
      %1204 = vmatprep.subr.mxu0 0.0
      %1205 = vmatpush2.msra.mxu0 0.0
      %1206 = vmatprep.subr.mxu0 0.0
      %1207 = vmatpush2.msra.mxu0 0.0
      %1208 = vmatprep.subr.mxu0 0.0
      %1209 = vmatpush2.msra.mxu0 0.0
      %1210 = vmatprep.subr.mxu0 0.0
      %1211 = vmatpush2.msra.mxu0 0.0
      %1212 = vmatprep.subr.mxu0 0.0
      %1213 = vmatpush2.msra.mxu0 0.0
      %1214 = vmatprep.subr.mxu0 0.0
      %1215 = vmatpush2.msra.mxu0 0.0
      %1216 = vmatprep.subr.mxu0 0.0
      %1217 = vmatpush2.msra.mxu0 0.0
      %1218 = vmatprep.subr.mxu0 0.0
      %1219 = vmatpush2.msra.mxu0 0.0
      %1220 = vmatprep.subr.mxu0 0.0
      %1221 = vmatpush2.msra.mxu0 0.0
      %1222 = vmatprep.subr.mxu0 0.0
      %1223 = vmatpush2.msra.mxu0 0.0
      %1224 = vmatprep.mubr.f32.mxu0 0.0
      %1225 = vmatmul.mubr.f32.gmra.mxu0 %v1156
      %v1226 = vpop.f32.mrf.mxu0
      %v1227 = vadd.f32 0.0, %v1226
      %v1228 = vpop.f32.mrf.mxu0
      %1229 = vmatprep.mubr.f32.mxu0 0.0
      %1230 = vmatmul.mubr.f32.gmra.mxu0 %v1158
      %v1231 = vpop.f32.mrf.mxu0
      %v1232 = vadd.f32 0.0, %v1231
      %v1233 = vpop.f32.mrf.mxu0
      %1234 = vdwg.mxu0
      %v1235 = vadd.f32 %v1086, %v1227
      %v1236 = vadd.f32 %v1091, %v1232
      %s1237 = scalar_lea.vmem %s218, 16
      %v1238 = vld [vmem:[%s1237] sm:$0xf]
      %v1239 = vld [vmem:[%s1237 + $0x4] sm:$0xf]
      %v1240 = vunpack.c.l.bf16 %v1238
      %v1241 = vunpack.c.l.bf16 %v1239
      %1243 = vset.pattern.permute.xlu0 96
      %1244 = vperm.xlu0 %1243, %v350
      %v1245 = vpop.permute.xlu0 %1244
      %1248 = vset.pattern.permute.xlu0 96
      %1249 = vperm.xlu0 %1248, %v355
      %v1250 = vpop.permute.xlu0 %1249
      %v1252 = vadd.f32 %v1245, %v417
      %v1253 = vadd.f32 %v1250, %v417
      %vm1254 = vcmp.gt.f32.partialorder %v1252, 0.0
      %vm1255 = vcmp.gt.f32.partialorder %v1253, 0.0
      %v1256 = vmul.f32 %v1252, 0.2
      %v1257 = vmul.f32 %v1253, 0.2
      %v1258 = vsel %vm1254, %v1252, %v1256
      %v1259 = vsel %vm1255, %v1253, %v1257
      %1262 = vrot.lane.b32.xlu0 %v1240, 32
      %v1263 = vpop.permute.xlu0 %1262
      %1264 = vrot.lane.b32.xlu0 %v1241, 32
      %v1265 = vpop.permute.xlu0 %1264
      %v1268 = vadd.f32 %v1258, %v1263
      %v1269 = vadd.f32 %v1259, %v1265
      %vm1270 = vcmask 392448
      %v1271 = vsel %vm1270, %v1268, -inf
      %1272 = vmax.xlane.f32.xlu0 %v1271
      %v1273 = vpop.xlane.xlu0 %1272
      %v1274 = vsel %vm1270, %v1269, -inf
      %1275 = vmax.xlane.f32.xlu0 %v1274
      %v1276 = vpop.xlane.xlu0 %1275
      %v1277 = vsub.f32 %v1268, %v1273
      %v1278 = vsub.f32 %v1269, %v1276
      %v1279 = vmul.f32 %v1277, 1.442695
      %v1280 = vpow.pop %v1279
      %v1281 = vmul.f32 %v1278, 1.442695
      %v1282 = vpow.pop %v1281
      %1285 = vrot.lane.b32.xlu0 %v1280, 96
      %v1286 = vpop.permute.xlu0 %1285
      %1287 = vrot.lane.b32.xlu0 %v1282, 96
      %v1288 = vpop.permute.xlu0 %1287
      %v1291 = vsel %vm428, %v1286, 0.0
      %1292 = vadd.xlane.f32.xlu0 %v1291
      %v1293 = vpop.xlane.xlu0 %1292
      %v1294 = vsel %vm428, %v1288, 0.0
      %1295 = vadd.xlane.f32.xlu0 %v1294
      %v1296 = vpop.xlane.xlu0 %1295
      %v1297 = vrcp.pop %v1293
      %v1298 = vrcp.pop %v1296
      %v1299 = vmul.f32 %v1297, 0.33333334
      %v1300 = vmul.f32 %v1298, 0.33333334
      %v1301 = vmul.f32 %v1280, %v1299
      %v1302 = vmul.f32 %v1282, %v1300
      %1303 = vset.pattern.permute.xlu0 97
      %1304 = vperm.xlu0 %1303, %v350
      %v1305 = vpop.permute.xlu0 %1304
      %1307 = vset.pattern.permute.xlu0 97
      %1308 = vperm.xlu0 %1307, %v355
      %v1309 = vpop.permute.xlu0 %1308
      %v1311 = vadd.f32 %v1305, %v464
      %v1312 = vadd.f32 %v1309, %v464
      %vm1313 = vcmp.gt.f32.partialorder %v1311, 0.0
      %vm1314 = vcmp.gt.f32.partialorder %v1312, 0.0
      %v1315 = vmul.f32 %v1311, 0.2
      %v1316 = vmul.f32 %v1312, 0.2
      %v1317 = vsel %vm1313, %v1311, %v1315
      %v1318 = vsel %vm1314, %v1312, %v1316
      %v1319 = vadd.f32 %v1317, %v1263
      %v1320 = vadd.f32 %v1318, %v1265
      %v1321 = vsel %vm1270, %v1319, -inf
      %1322 = vmax.xlane.f32.xlu0 %v1321
      %v1323 = vpop.xlane.xlu0 %1322
      %v1324 = vsel %vm1270, %v1320, -inf
      %1325 = vmax.xlane.f32.xlu0 %v1324
      %v1326 = vpop.xlane.xlu0 %1325
      %v1327 = vsub.f32 %v1319, %v1323
      %v1328 = vsub.f32 %v1320, %v1326
      %v1329 = vmul.f32 %v1327, 1.442695
      %v1330 = vpow.pop %v1329
      %v1331 = vmul.f32 %v1328, 1.442695
      %v1332 = vpow.pop %v1331
      %1335 = vrot.lane.b32.xlu0 %v1330, 96
      %v1336 = vpop.permute.xlu0 %1335
      %1337 = vrot.lane.b32.xlu0 %v1332, 96
      %v1338 = vpop.permute.xlu0 %1337
      %v1341 = vsel %vm428, %v1336, 0.0
      %1342 = vadd.xlane.f32.xlu0 %v1341
      %v1343 = vpop.xlane.xlu0 %1342
      %v1344 = vsel %vm428, %v1338, 0.0
      %1345 = vadd.xlane.f32.xlu0 %v1344
      %v1346 = vpop.xlane.xlu0 %1345
      %v1347 = vrcp.pop %v1343
      %v1348 = vrcp.pop %v1346
      %v1349 = vmul.f32 %v1347, 0.33333334
      %v1350 = vmul.f32 %v1348, 0.33333334
      %v1351 = vmul.f32 %v1330, %v1349
      %v1352 = vmul.f32 %v1332, %v1350
      %1355 = vrot.lane.b32.xlu0 %v1351, 96
      %v1356 = vpop.permute.xlu0 %1355
      %1357 = vrot.lane.b32.xlu0 %v1352, 96
      %v1358 = vpop.permute.xlu0 %1357
      %1359 = vrot.lane.b32.xlu0 %v350, 96
      %v1360 = vpop.permute.xlu0 %1359
      %1361 = vrot.lane.b32.xlu0 %v355, 96
      %v1362 = vpop.permute.xlu0 %1361
      %v1365 = vsel %vm428, %v1356, 0
      %v1367 = vsel %vm428, %v1358, 0
      %1369 = vmatprep.subr.mxu0 0.0
      %1370 = vmatpush1.msra.mxu0 0.0
      %1371 = vmatprep.subr.mxu0 0.0
      %1372 = vmatpush1.msra.mxu0 0.0
      %1373 = vmatprep.subr.mxu0 0.0
      %1374 = vmatpush1.msra.mxu0 0.0
      %1375 = vmatprep.subr.mxu0 0.0
      %1376 = vmatpush1.msra.mxu0 0.0
      %1377 = vmatprep.subr.mxu0 0.0
      %1378 = vmatpush1.msra.mxu0 0.0
      %1379 = vmatprep.subr.mxu0 0.0
      %1380 = vmatpush1.msra.mxu0 0.0
      %1381 = vmatprep.subr.mxu0 0.0
      %1382 = vmatpush1.msra.mxu0 0.0
      %1383 = vmatprep.subr.mxu0 0.0
      %1384 = vmatpush1.msra.mxu0 0.0
      %1385 = vmatprep.subr.mxu0 0.0
      %1386 = vmatpush1.msra.mxu0 0.0
      %1387 = vmatprep.subr.mxu0 0.0
      %1388 = vmatpush1.msra.mxu0 0.0
      %1389 = vmatprep.subr.mxu0 0.0
      %1390 = vmatpush1.msra.mxu0 0.0
      %1391 = vmatprep.subr.mxu0 0.0
      %1392 = vmatpush1.msra.mxu0 0.0
      %1393 = vmatprep.subr.mxu0 0.0
      %1394 = vmatpush1.msra.mxu0 0.0
      %1395 = vmatprep.subr.mxu0 0.0
      %1396 = vmatpush1.msra.mxu0 0.0
      %1397 = vmatprep.subr.mxu0 0.0
      %1398 = vmatpush1.msra.mxu0 %v1362
      %1399 = vmatprep.subr.mxu0 0.0
      %1400 = vmatpush1.msra.mxu0 %v1360
      %1401 = vmatprep.subr.mxu0 0.0
      %1402 = vmatpush2.msra.mxu0 0.0
      %1403 = vmatprep.subr.mxu0 0.0
      %1404 = vmatpush2.msra.mxu0 0.0
      %1405 = vmatprep.subr.mxu0 0.0
      %1406 = vmatpush2.msra.mxu0 0.0
      %1407 = vmatprep.subr.mxu0 0.0
      %1408 = vmatpush2.msra.mxu0 0.0
      %1409 = vmatprep.subr.mxu0 0.0
      %1410 = vmatpush2.msra.mxu0 0.0
      %1411 = vmatprep.subr.mxu0 0.0
      %1412 = vmatpush2.msra.mxu0 0.0
      %1413 = vmatprep.subr.mxu0 0.0
      %1414 = vmatpush2.msra.mxu0 0.0
      %1415 = vmatprep.subr.mxu0 0.0
      %1416 = vmatpush2.msra.mxu0 0.0
      %1417 = vmatprep.subr.mxu0 0.0
      %1418 = vmatpush2.msra.mxu0 0.0
      %1419 = vmatprep.subr.mxu0 0.0
      %1420 = vmatpush2.msra.mxu0 0.0
      %1421 = vmatprep.subr.mxu0 0.0
      %1422 = vmatpush2.msra.mxu0 0.0
      %1423 = vmatprep.subr.mxu0 0.0
      %1424 = vmatpush2.msra.mxu0 0.0
      %1425 = vmatprep.subr.mxu0 0.0
      %1426 = vmatpush2.msra.mxu0 0.0
      %1427 = vmatprep.subr.mxu0 0.0
      %1428 = vmatpush2.msra.mxu0 0.0
      %1429 = vmatprep.subr.mxu0 0.0
      %1430 = vmatpush2.msra.mxu0 0.0
      %1431 = vmatprep.subr.mxu0 0.0
      %1432 = vmatpush2.msra.mxu0 0.0
      %1433 = vmatprep.mubr.f32.mxu0 0.0
      %1434 = vmatmul.mubr.f32.gmra.mxu0 %v1365
      %v1435 = vpop.f32.mrf.mxu0
      %v1436 = vadd.f32 0.0, %v1435
      %v1437 = vpop.f32.mrf.mxu0
      %1438 = vmatprep.mubr.f32.mxu0 0.0
      %1439 = vmatmul.mubr.f32.gmra.mxu0 %v1367
      %v1440 = vpop.f32.mrf.mxu0
      %v1441 = vadd.f32 0.0, %v1440
      %v1442 = vpop.f32.mrf.mxu0
      %1443 = vdwg.mxu0
      %1446 = vrot.lane.b32.xlu0 %v1301, 96
      %v1447 = vpop.permute.xlu0 %1446
      %1448 = vrot.lane.b32.xlu0 %v1302, 96
      %v1449 = vpop.permute.xlu0 %1448
      %v1450 = vsel %vm428, %v1447, 0
      %v1452 = vsel %vm428, %v1449, 0
      %1454 = vmatprep.subr.mxu0 0.0
      %1455 = vmatpush1.msra.mxu0 0.0
      %1456 = vmatprep.subr.mxu0 0.0
      %1457 = vmatpush1.msra.mxu0 0.0
      %1458 = vmatprep.subr.mxu0 0.0
      %1459 = vmatpush1.msra.mxu0 0.0
      %1460 = vmatprep.subr.mxu0 0.0
      %1461 = vmatpush1.msra.mxu0 0.0
      %1462 = vmatprep.subr.mxu0 0.0
      %1463 = vmatpush1.msra.mxu0 0.0
      %1464 = vmatprep.subr.mxu0 0.0
      %1465 = vmatpush1.msra.mxu0 0.0
      %1466 = vmatprep.subr.mxu0 0.0
      %1467 = vmatpush1.msra.mxu0 0.0
      %1468 = vmatprep.subr.mxu0 0.0
      %1469 = vmatpush1.msra.mxu0 0.0
      %1470 = vmatprep.subr.mxu0 0.0
      %1471 = vmatpush1.msra.mxu0 0.0
      %1472 = vmatprep.subr.mxu0 0.0
      %1473 = vmatpush1.msra.mxu0 0.0
      %1474 = vmatprep.subr.mxu0 0.0
      %1475 = vmatpush1.msra.mxu0 0.0
      %1476 = vmatprep.subr.mxu0 0.0
      %1477 = vmatpush1.msra.mxu0 0.0
      %1478 = vmatprep.subr.mxu0 0.0
      %1479 = vmatpush1.msra.mxu0 0.0
      %1480 = vmatprep.subr.mxu0 0.0
      %1481 = vmatpush1.msra.mxu0 0.0
      %1482 = vmatprep.subr.mxu0 0.0
      %1483 = vmatpush1.msra.mxu0 %v355
      %1484 = vmatprep.subr.mxu0 0.0
      %1485 = vmatpush1.msra.mxu0 %v350
      %1486 = vmatprep.subr.mxu0 0.0
      %1487 = vmatpush2.msra.mxu0 0.0
      %1488 = vmatprep.subr.mxu0 0.0
      %1489 = vmatpush2.msra.mxu0 0.0
      %1490 = vmatprep.subr.mxu0 0.0
      %1491 = vmatpush2.msra.mxu0 0.0
      %1492 = vmatprep.subr.mxu0 0.0
      %1493 = vmatpush2.msra.mxu0 0.0
      %1494 = vmatprep.subr.mxu0 0.0
      %1495 = vmatpush2.msra.mxu0 0.0
      %1496 = vmatprep.subr.mxu0 0.0
      %1497 = vmatpush2.msra.mxu0 0.0
      %1498 = vmatprep.subr.mxu0 0.0
      %1499 = vmatpush2.msra.mxu0 0.0
      %1500 = vmatprep.subr.mxu0 0.0
      %1501 = vmatpush2.msra.mxu0 0.0
      %1502 = vmatprep.subr.mxu0 0.0
      %1503 = vmatpush2.msra.mxu0 0.0
      %1504 = vmatprep.subr.mxu0 0.0
      %1505 = vmatpush2.msra.mxu0 0.0
      %1506 = vmatprep.subr.mxu0 0.0
      %1507 = vmatpush2.msra.mxu0 0.0
      %1508 = vmatprep.subr.mxu0 0.0
      %1509 = vmatpush2.msra.mxu0 0.0
      %1510 = vmatprep.subr.mxu0 0.0
      %1511 = vmatpush2.msra.mxu0 0.0
      %1512 = vmatprep.subr.mxu0 0.0
      %1513 = vmatpush2.msra.mxu0 0.0
      %1514 = vmatprep.subr.mxu0 0.0
      %1515 = vmatpush2.msra.mxu0 0.0
      %1516 = vmatprep.subr.mxu0 0.0
      %1517 = vmatpush2.msra.mxu0 0.0
      %1518 = vmatprep.mubr.f32.mxu0 0.0
      %1519 = vmatmul.mubr.f32.gmra.mxu0 %v1450
      %v1520 = vpop.f32.mrf.mxu0
      %v1521 = vadd.f32 %v1436, %v1520
      %v1522 = vpop.f32.mrf.mxu0
      %1523 = vmatprep.mubr.f32.mxu0 0.0
      %1524 = vmatmul.mubr.f32.gmra.mxu0 %v1452
      %v1525 = vpop.f32.mrf.mxu0
      %v1526 = vadd.f32 %v1441, %v1525
      %v1527 = vpop.f32.mrf.mxu0
      %1528 = vdwg.mxu0
      %1529 = vset.pattern.permute.xlu0 98
      %1530 = vperm.xlu0 %1529, %v350
      %v1531 = vpop.permute.xlu0 %1530
      %1533 = vset.pattern.permute.xlu0 98
      %1534 = vperm.xlu0 %1533, %v355
      %v1535 = vpop.permute.xlu0 %1534
      %v1537 = vadd.f32 %v1531, %v678
      %v1538 = vadd.f32 %v1535, %v678
      %vm1539 = vcmp.gt.f32.partialorder %v1537, 0.0
      %vm1540 = vcmp.gt.f32.partialorder %v1538, 0.0
      %v1541 = vmul.f32 %v1537, 0.2
      %v1542 = vmul.f32 %v1538, 0.2
      %v1543 = vsel %vm1539, %v1537, %v1541
      %v1544 = vsel %vm1540, %v1538, %v1542
      %v1545 = vadd.f32 %v1543, %v1263
      %v1546 = vadd.f32 %v1544, %v1265
      %v1547 = vsel %vm1270, %v1545, -inf
      %1548 = vmax.xlane.f32.xlu0 %v1547
      %v1549 = vpop.xlane.xlu0 %1548
      %v1550 = vsel %vm1270, %v1546, -inf
      %1551 = vmax.xlane.f32.xlu0 %v1550
      %v1552 = vpop.xlane.xlu0 %1551
      %v1553 = vsub.f32 %v1545, %v1549
      %v1554 = vsub.f32 %v1546, %v1552
      %v1555 = vmul.f32 %v1553, 1.442695
      %v1556 = vpow.pop %v1555
      %v1557 = vmul.f32 %v1554, 1.442695
      %v1558 = vpow.pop %v1557
      %1561 = vrot.lane.b32.xlu0 %v1556, 96
      %v1562 = vpop.permute.xlu0 %1561
      %1563 = vrot.lane.b32.xlu0 %v1558, 96
      %v1564 = vpop.permute.xlu0 %1563
      %v1567 = vsel %vm428, %v1562, 0.0
      %1568 = vadd.xlane.f32.xlu0 %v1567
      %v1569 = vpop.xlane.xlu0 %1568
      %v1570 = vsel %vm428, %v1564, 0.0
      %1571 = vadd.xlane.f32.xlu0 %v1570
      %v1572 = vpop.xlane.xlu0 %1571
      %v1573 = vrcp.pop %v1569
      %v1574 = vrcp.pop %v1572
      %v1575 = vmul.f32 %v1573, 0.33333334
      %v1576 = vmul.f32 %v1574, 0.33333334
      %v1577 = vmul.f32 %v1556, %v1575
      %v1578 = vmul.f32 %v1558, %v1576
      %1581 = vrot.lane.b32.xlu0 %v1577, 96
      %v1582 = vpop.permute.xlu0 %1581
      %1583 = vrot.lane.b32.xlu0 %v1578, 96
      %v1584 = vpop.permute.xlu0 %1583
      %1585 = vrot.lane.b32.xlu0 %v350, 64
      %v1586 = vpop.permute.xlu0 %1585
      %1587 = vrot.lane.b32.xlu0 %v355, 64
      %v1588 = vpop.permute.xlu0 %1587
      %v1591 = vsel %vm428, %v1582, 0
      %v1593 = vsel %vm428, %v1584, 0
      %1595 = vmatprep.subr.mxu0 0.0
      %1596 = vmatpush1.msra.mxu0 0.0
      %1597 = vmatprep.subr.mxu0 0.0
      %1598 = vmatpush1.msra.mxu0 0.0
      %1599 = vmatprep.subr.mxu0 0.0
      %1600 = vmatpush1.msra.mxu0 0.0
      %1601 = vmatprep.subr.mxu0 0.0
      %1602 = vmatpush1.msra.mxu0 0.0
      %1603 = vmatprep.subr.mxu0 0.0
      %1604 = vmatpush1.msra.mxu0 0.0
      %1605 = vmatprep.subr.mxu0 0.0
      %1606 = vmatpush1.msra.mxu0 0.0
      %1607 = vmatprep.subr.mxu0 0.0
      %1608 = vmatpush1.msra.mxu0 0.0
      %1609 = vmatprep.subr.mxu0 0.0
      %1610 = vmatpush1.msra.mxu0 0.0
      %1611 = vmatprep.subr.mxu0 0.0
      %1612 = vmatpush1.msra.mxu0 0.0
      %1613 = vmatprep.subr.mxu0 0.0
      %1614 = vmatpush1.msra.mxu0 0.0
      %1615 = vmatprep.subr.mxu0 0.0
      %1616 = vmatpush1.msra.mxu0 0.0
      %1617 = vmatprep.subr.mxu0 0.0
      %1618 = vmatpush1.msra.mxu0 0.0
      %1619 = vmatprep.subr.mxu0 0.0
      %1620 = vmatpush1.msra.mxu0 0.0
      %1621 = vmatprep.subr.mxu0 0.0
      %1622 = vmatpush1.msra.mxu0 0.0
      %1623 = vmatprep.subr.mxu0 0.0
      %1624 = vmatpush1.msra.mxu0 %v1588
      %1625 = vmatprep.subr.mxu0 0.0
      %1626 = vmatpush1.msra.mxu0 %v1586
      %1627 = vmatprep.subr.mxu0 0.0
      %1628 = vmatpush2.msra.mxu0 0.0
      %1629 = vmatprep.subr.mxu0 0.0
      %1630 = vmatpush2.msra.mxu0 0.0
      %1631 = vmatprep.subr.mxu0 0.0
      %1632 = vmatpush2.msra.mxu0 0.0
      %1633 = vmatprep.subr.mxu0 0.0
      %1634 = vmatpush2.msra.mxu0 0.0
      %1635 = vmatprep.subr.mxu0 0.0
      %1636 = vmatpush2.msra.mxu0 0.0
      %1637 = vmatprep.subr.mxu0 0.0
      %1638 = vmatpush2.msra.mxu0 0.0
      %1639 = vmatprep.subr.mxu0 0.0
      %1640 = vmatpush2.msra.mxu0 0.0
      %1641 = vmatprep.subr.mxu0 0.0
      %1642 = vmatpush2.msra.mxu0 0.0
      %1643 = vmatprep.subr.mxu0 0.0
      %1644 = vmatpush2.msra.mxu0 0.0
      %1645 = vmatprep.subr.mxu0 0.0
      %1646 = vmatpush2.msra.mxu0 0.0
      %1647 = vmatprep.subr.mxu0 0.0
      %1648 = vmatpush2.msra.mxu0 0.0
      %1649 = vmatprep.subr.mxu0 0.0
      %1650 = vmatpush2.msra.mxu0 0.0
      %1651 = vmatprep.subr.mxu0 0.0
      %1652 = vmatpush2.msra.mxu0 0.0
      %1653 = vmatprep.subr.mxu0 0.0
      %1654 = vmatpush2.msra.mxu0 0.0
      %1655 = vmatprep.subr.mxu0 0.0
      %1656 = vmatpush2.msra.mxu0 0.0
      %1657 = vmatprep.subr.mxu0 0.0
      %1658 = vmatpush2.msra.mxu0 0.0
      %1659 = vmatprep.mubr.f32.mxu0 0.0
      %1660 = vmatmul.mubr.f32.gmra.mxu0 %v1591
      %v1661 = vpop.f32.mrf.mxu0
      %v1662 = vadd.f32 0.0, %v1661
      %v1663 = vpop.f32.mrf.mxu0
      %1664 = vmatprep.mubr.f32.mxu0 0.0
      %1665 = vmatmul.mubr.f32.gmra.mxu0 %v1593
      %v1666 = vpop.f32.mrf.mxu0
      %v1667 = vadd.f32 0.0, %v1666
      %v1668 = vpop.f32.mrf.mxu0
      %1669 = vdwg.mxu0
      %v1670 = vadd.f32 %v1521, %v1662
      %v1671 = vadd.f32 %v1526, %v1667
      %s1672 = scalar_lea.vmem %s218, 24
      %v1673 = vld [vmem:[%s1672] sm:$0xf]
      %v1674 = vld [vmem:[%s1672 + $0x4] sm:$0xf]
      %v1675 = vunpack.c.l.bf16 %v1673
      %v1676 = vunpack.c.l.bf16 %v1674
      %1678 = vset.pattern.permute.xlu0 96
      %1679 = vperm.xlu0 %1678, %v360
      %v1680 = vpop.permute.xlu0 %1679
      %1683 = vset.pattern.permute.xlu0 96
      %1684 = vperm.xlu0 %1683, %v365
      %v1685 = vpop.permute.xlu0 %1684
      %v1687 = vadd.f32 %v1680, %v417
      %v1688 = vadd.f32 %v1685, %v417
      %vm1689 = vcmp.gt.f32.partialorder %v1687, 0.0
      %vm1690 = vcmp.gt.f32.partialorder %v1688, 0.0
      %v1691 = vmul.f32 %v1687, 0.2
      %v1692 = vmul.f32 %v1688, 0.2
      %v1693 = vsel %vm1689, %v1687, %v1691
      %v1694 = vsel %vm1690, %v1688, %v1692
      %1697 = vrot.lane.b32.xlu0 %v1675, 48
      %v1698 = vpop.permute.xlu0 %1697
      %1699 = vrot.lane.b32.xlu0 %v1676, 48
      %v1700 = vpop.permute.xlu0 %1699
      %v1703 = vadd.f32 %v1693, %v1698
      %v1704 = vadd.f32 %v1694, %v1700
      %vm1705 = vcmask 523648
      %v1706 = vsel %vm1705, %v1703, -inf
      %1707 = vmax.xlane.f32.xlu0 %v1706
      %v1708 = vpop.xlane.xlu0 %1707
      %v1709 = vsel %vm1705, %v1704, -inf
      %1710 = vmax.xlane.f32.xlu0 %v1709
      %v1711 = vpop.xlane.xlu0 %1710
      %v1712 = vsub.f32 %v1703, %v1708
      %v1713 = vsub.f32 %v1704, %v1711
      %v1714 = vmul.f32 %v1712, 1.442695
      %v1715 = vpow.pop %v1714
      %v1716 = vmul.f32 %v1713, 1.442695
      %v1717 = vpow.pop %v1716
      %1720 = vrot.lane.b32.xlu0 %v1715, 80
      %v1721 = vpop.permute.xlu0 %1720
      %1722 = vrot.lane.b32.xlu0 %v1717, 80
      %v1723 = vpop.permute.xlu0 %1722
      %v1726 = vsel %vm428, %v1721, 0.0
      %1727 = vadd.xlane.f32.xlu0 %v1726
      %v1728 = vpop.xlane.xlu0 %1727
      %v1729 = vsel %vm428, %v1723, 0.0
      %1730 = vadd.xlane.f32.xlu0 %v1729
      %v1731 = vpop.xlane.xlu0 %1730
      %v1732 = vrcp.pop %v1728
      %v1733 = vrcp.pop %v1731
      %v1734 = vmul.f32 %v1732, 0.33333334
      %v1735 = vmul.f32 %v1733, 0.33333334
      %v1736 = vmul.f32 %v1715, %v1734
      %v1737 = vmul.f32 %v1717, %v1735
      %1738 = vset.pattern.permute.xlu0 97
      %1739 = vperm.xlu0 %1738, %v360
      %v1740 = vpop.permute.xlu0 %1739
      %1742 = vset.pattern.permute.xlu0 97
      %1743 = vperm.xlu0 %1742, %v365
      %v1744 = vpop.permute.xlu0 %1743
      %v1746 = vadd.f32 %v1740, %v464
      %v1747 = vadd.f32 %v1744, %v464
      %vm1748 = vcmp.gt.f32.partialorder %v1746, 0.0
      %vm1749 = vcmp.gt.f32.partialorder %v1747, 0.0
      %v1750 = vmul.f32 %v1746, 0.2
      %v1751 = vmul.f32 %v1747, 0.2
      %v1752 = vsel %vm1748, %v1746, %v1750
      %v1753 = vsel %vm1749, %v1747, %v1751
      %v1754 = vadd.f32 %v1752, %v1698
      %v1755 = vadd.f32 %v1753, %v1700
      %v1756 = vsel %vm1705, %v1754, -inf
      %1757 = vmax.xlane.f32.xlu0 %v1756
      %v1758 = vpop.xlane.xlu0 %1757
      %v1759 = vsel %vm1705, %v1755, -inf
      %1760 = vmax.xlane.f32.xlu0 %v1759
      %v1761 = vpop.xlane.xlu0 %1760
      %v1762 = vsub.f32 %v1754, %v1758
      %v1763 = vsub.f32 %v1755, %v1761
      %v1764 = vmul.f32 %v1762, 1.442695
      %v1765 = vpow.pop %v1764
      %v1766 = vmul.f32 %v1763, 1.442695
      %v1767 = vpow.pop %v1766
      %1770 = vrot.lane.b32.xlu0 %v1765, 80
      %v1771 = vpop.permute.xlu0 %1770
      %1772 = vrot.lane.b32.xlu0 %v1767, 80
      %v1773 = vpop.permute.xlu0 %1772
      %v1776 = vsel %vm428, %v1771, 0.0
      %1777 = vadd.xlane.f32.xlu0 %v1776
      %v1778 = vpop.xlane.xlu0 %1777
      %v1779 = vsel %vm428, %v1773, 0.0
      %1780 = vadd.xlane.f32.xlu0 %v1779
      %v1781 = vpop.xlane.xlu0 %1780
      %v1782 = vrcp.pop %v1778
      %v1783 = vrcp.pop %v1781
      %v1784 = vmul.f32 %v1782, 0.33333334
      %v1785 = vmul.f32 %v1783, 0.33333334
      %v1786 = vmul.f32 %v1765, %v1784
      %v1787 = vmul.f32 %v1767, %v1785
      %1790 = vrot.lane.b32.xlu0 %v1786, 80
      %v1791 = vpop.permute.xlu0 %1790
      %1792 = vrot.lane.b32.xlu0 %v1787, 80
      %v1793 = vpop.permute.xlu0 %1792
      %1794 = vrot.lane.b32.xlu0 %v360, 96
      %v1795 = vpop.permute.xlu0 %1794
      %1796 = vrot.lane.b32.xlu0 %v365, 96
      %v1797 = vpop.permute.xlu0 %1796
      %v1800 = vsel %vm428, %v1791, 0
      %v1802 = vsel %vm428, %v1793, 0
      %1804 = vmatprep.subr.mxu0 0.0
      %1805 = vmatpush1.msra.mxu0 0.0
      %1806 = vmatprep.subr.mxu0 0.0
      %1807 = vmatpush1.msra.mxu0 0.0
      %1808 = vmatprep.subr.mxu0 0.0
      %1809 = vmatpush1.msra.mxu0 0.0
      %1810 = vmatprep.subr.mxu0 0.0
      %1811 = vmatpush1.msra.mxu0 0.0
      %1812 = vmatprep.subr.mxu0 0.0
      %1813 = vmatpush1.msra.mxu0 0.0
      %1814 = vmatprep.subr.mxu0 0.0
      %1815 = vmatpush1.msra.mxu0 0.0
      %1816 = vmatprep.subr.mxu0 0.0
      %1817 = vmatpush1.msra.mxu0 0.0
      %1818 = vmatprep.subr.mxu0 0.0
      %1819 = vmatpush1.msra.mxu0 0.0
      %1820 = vmatprep.subr.mxu0 0.0
      %1821 = vmatpush1.msra.mxu0 0.0
      %1822 = vmatprep.subr.mxu0 0.0
      %1823 = vmatpush1.msra.mxu0 0.0
      %1824 = vmatprep.subr.mxu0 0.0
      %1825 = vmatpush1.msra.mxu0 0.0
      %1826 = vmatprep.subr.mxu0 0.0
      %1827 = vmatpush1.msra.mxu0 0.0
      %1828 = vmatprep.subr.mxu0 0.0
      %1829 = vmatpush1.msra.mxu0 0.0
      %1830 = vmatprep.subr.mxu0 0.0
      %1831 = vmatpush1.msra.mxu0 0.0
      %1832 = vmatprep.subr.mxu0 0.0
      %1833 = vmatpush1.msra.mxu0 %v1797
      %1834 = vmatprep.subr.mxu0 0.0
      %1835 = vmatpush1.msra.mxu0 %v1795
      %1836 = vmatprep.subr.mxu0 0.0
      %1837 = vmatpush2.msra.mxu0 0.0
      %1838 = vmatprep.subr.mxu0 0.0
      %1839 = vmatpush2.msra.mxu0 0.0
      %1840 = vmatprep.subr.mxu0 0.0
      %1841 = vmatpush2.msra.mxu0 0.0
      %1842 = vmatprep.subr.mxu0 0.0
      %1843 = vmatpush2.msra.mxu0 0.0
      %1844 = vmatprep.subr.mxu0 0.0
      %1845 = vmatpush2.msra.mxu0 0.0
      %1846 = vmatprep.subr.mxu0 0.0
      %1847 = vmatpush2.msra.mxu0 0.0
      %1848 = vmatprep.subr.mxu0 0.0
      %1849 = vmatpush2.msra.mxu0 0.0
      %1850 = vmatprep.subr.mxu0 0.0
      %1851 = vmatpush2.msra.mxu0 0.0
      %1852 = vmatprep.subr.mxu0 0.0
      %1853 = vmatpush2.msra.mxu0 0.0
      %1854 = vmatprep.subr.mxu0 0.0
      %1855 = vmatpush2.msra.mxu0 0.0
      %1856 = vmatprep.subr.mxu0 0.0
      %1857 = vmatpush2.msra.mxu0 0.0
      %1858 = vmatprep.subr.mxu0 0.0
      %1859 = vmatpush2.msra.mxu0 0.0
      %1860 = vmatprep.subr.mxu0 0.0
      %1861 = vmatpush2.msra.mxu0 0.0
      %1862 = vmatprep.subr.mxu0 0.0
      %1863 = vmatpush2.msra.mxu0 0.0
      %1864 = vmatprep.subr.mxu0 0.0
      %1865 = vmatpush2.msra.mxu0 0.0
      %1866 = vmatprep.subr.mxu0 0.0
      %1867 = vmatpush2.msra.mxu0 0.0
      %1868 = vmatprep.mubr.f32.mxu0 0.0
      %1869 = vmatmul.mubr.f32.gmra.mxu0 %v1800
      %v1870 = vpop.f32.mrf.mxu0
      %v1871 = vadd.f32 0.0, %v1870
      %v1872 = vpop.f32.mrf.mxu0
      %1873 = vmatprep.mubr.f32.mxu0 0.0
      %1874 = vmatmul.mubr.f32.gmra.mxu0 %v1802
      %v1875 = vpop.f32.mrf.mxu0
      %v1876 = vadd.f32 0.0, %v1875
      %v1877 = vpop.f32.mrf.mxu0
      %1878 = vdwg.mxu0
      %1881 = vrot.lane.b32.xlu0 %v1736, 80
      %v1882 = vpop.permute.xlu0 %1881
      %1883 = vrot.lane.b32.xlu0 %v1737, 80
      %v1884 = vpop.permute.xlu0 %1883
      %v1885 = vsel %vm428, %v1882, 0
      %v1887 = vsel %vm428, %v1884, 0
      %1889 = vmatprep.subr.mxu0 0.0
      %1890 = vmatpush1.msra.mxu0 0.0
      %1891 = vmatprep.subr.mxu0 0.0
      %1892 = vmatpush1.msra.mxu0 0.0
      %1893 = vmatprep.subr.mxu0 0.0
      %1894 = vmatpush1.msra.mxu0 0.0
      %1895 = vmatprep.subr.mxu0 0.0
      %1896 = vmatpush1.msra.mxu0 0.0
      %1897 = vmatprep.subr.mxu0 0.0
      %1898 = vmatpush1.msra.mxu0 0.0
      %1899 = vmatprep.subr.mxu0 0.0
      %1900 = vmatpush1.msra.mxu0 0.0
      %1901 = vmatprep.subr.mxu0 0.0
      %1902 = vmatpush1.msra.mxu0 0.0
      %1903 = vmatprep.subr.mxu0 0.0
      %1904 = vmatpush1.msra.mxu0 0.0
      %1905 = vmatprep.subr.mxu0 0.0
      %1906 = vmatpush1.msra.mxu0 0.0
      %1907 = vmatprep.subr.mxu0 0.0
      %1908 = vmatpush1.msra.mxu0 0.0
      %1909 = vmatprep.subr.mxu0 0.0
      %1910 = vmatpush1.msra.mxu0 0.0
      %1911 = vmatprep.subr.mxu0 0.0
      %1912 = vmatpush1.msra.mxu0 0.0
      %1913 = vmatprep.subr.mxu0 0.0
      %1914 = vmatpush1.msra.mxu0 0.0
      %1915 = vmatprep.subr.mxu0 0.0
      %1916 = vmatpush1.msra.mxu0 0.0
      %1917 = vmatprep.subr.mxu0 0.0
      %1918 = vmatpush1.msra.mxu0 %v365
      %1919 = vmatprep.subr.mxu0 0.0
      %1920 = vmatpush1.msra.mxu0 %v360
      %1921 = vmatprep.subr.mxu0 0.0
      %1922 = vmatpush2.msra.mxu0 0.0
      %1923 = vmatprep.subr.mxu0 0.0
      %1924 = vmatpush2.msra.mxu0 0.0
      %1925 = vmatprep.subr.mxu0 0.0
      %1926 = vmatpush2.msra.mxu0 0.0
      %1927 = vmatprep.subr.mxu0 0.0
      %1928 = vmatpush2.msra.mxu0 0.0
      %1929 = vmatprep.subr.mxu0 0.0
      %1930 = vmatpush2.msra.mxu0 0.0
      %1931 = vmatprep.subr.mxu0 0.0
      %1932 = vmatpush2.msra.mxu0 0.0
      %1933 = vmatprep.subr.mxu0 0.0
      %1934 = vmatpush2.msra.mxu0 0.0
      %1935 = vmatprep.subr.mxu0 0.0
      %1936 = vmatpush2.msra.mxu0 0.0
      %1937 = vmatprep.subr.mxu0 0.0
      %1938 = vmatpush2.msra.mxu0 0.0
      %1939 = vmatprep.subr.mxu0 0.0
      %1940 = vmatpush2.msra.mxu0 0.0
      %1941 = vmatprep.subr.mxu0 0.0
      %1942 = vmatpush2.msra.mxu0 0.0
      %1943 = vmatprep.subr.mxu0 0.0
      %1944 = vmatpush2.msra.mxu0 0.0
      %1945 = vmatprep.subr.mxu0 0.0
      %1946 = vmatpush2.msra.mxu0 0.0
      %1947 = vmatprep.subr.mxu0 0.0
      %1948 = vmatpush2.msra.mxu0 0.0
      %1949 = vmatprep.subr.mxu0 0.0
      %1950 = vmatpush2.msra.mxu0 0.0
      %1951 = vmatprep.subr.mxu0 0.0
      %1952 = vmatpush2.msra.mxu0 0.0
      %1953 = vmatprep.mubr.f32.mxu0 0.0
      %1954 = vmatmul.mubr.f32.gmra.mxu0 %v1885
      %v1955 = vpop.f32.mrf.mxu0
      %v1956 = vadd.f32 %v1871, %v1955
      %v1957 = vpop.f32.mrf.mxu0
      %1958 = vmatprep.mubr.f32.mxu0 0.0
      %1959 = vmatmul.mubr.f32.gmra.mxu0 %v1887
      %v1960 = vpop.f32.mrf.mxu0
      %v1961 = vadd.f32 %v1876, %v1960
      %v1962 = vpop.f32.mrf.mxu0
      %1963 = vdwg.mxu0
      %1964 = vset.pattern.permute.xlu0 98
      %1965 = vperm.xlu0 %1964, %v360
      %v1966 = vpop.permute.xlu0 %1965
      %1968 = vset.pattern.permute.xlu0 98
      %1969 = vperm.xlu0 %1968, %v365
      %v1970 = vpop.permute.xlu0 %1969
      %v1972 = vadd.f32 %v1966, %v678
      %v1973 = vadd.f32 %v1970, %v678
      %vm1974 = vcmp.gt.f32.partialorder %v1972, 0.0
      %vm1975 = vcmp.gt.f32.partialorder %v1973, 0.0
      %v1976 = vmul.f32 %v1972, 0.2
      %v1977 = vmul.f32 %v1973, 0.2
      %v1978 = vsel %vm1974, %v1972, %v1976
      %v1979 = vsel %vm1975, %v1973, %v1977
      %v1980 = vadd.f32 %v1978, %v1698
      %v1981 = vadd.f32 %v1979, %v1700
      %v1982 = vsel %vm1705, %v1980, -inf
      %1983 = vmax.xlane.f32.xlu0 %v1982
      %v1984 = vpop.xlane.xlu0 %1983
      %v1985 = vsel %vm1705, %v1981, -inf
      %1986 = vmax.xlane.f32.xlu0 %v1985
      %v1987 = vpop.xlane.xlu0 %1986
      %v1988 = vsub.f32 %v1980, %v1984
      %v1989 = vsub.f32 %v1981, %v1987
      %v1990 = vmul.f32 %v1988, 1.442695
      %v1991 = vpow.pop %v1990
      %v1992 = vmul.f32 %v1989, 1.442695
      %v1993 = vpow.pop %v1992
      %1996 = vrot.lane.b32.xlu0 %v1991, 80
      %v1997 = vpop.permute.xlu0 %1996
      %1998 = vrot.lane.b32.xlu0 %v1993, 80
      %v1999 = vpop.permute.xlu0 %1998
      %v2002 = vsel %vm428, %v1997, 0.0
      %2003 = vadd.xlane.f32.xlu0 %v2002
      %v2004 = vpop.xlane.xlu0 %2003
      %v2005 = vsel %vm428, %v1999, 0.0
      %2006 = vadd.xlane.f32.xlu0 %v2005
      %v2007 = vpop.xlane.xlu0 %2006
      %v2008 = vrcp.pop %v2004
      %v2009 = vrcp.pop %v2007
      %v2010 = vmul.f32 %v2008, 0.33333334
      %v2011 = vmul.f32 %v2009, 0.33333334
      %v2012 = vmul.f32 %v1991, %v2010
      %v2013 = vmul.f32 %v1993, %v2011
      %2016 = vrot.lane.b32.xlu0 %v2012, 80
      %v2017 = vpop.permute.xlu0 %2016
      %2018 = vrot.lane.b32.xlu0 %v2013, 80
      %v2019 = vpop.permute.xlu0 %2018
      %2020 = vrot.lane.b32.xlu0 %v360, 64
      %v2021 = vpop.permute.xlu0 %2020
      %2022 = vrot.lane.b32.xlu0 %v365, 64
      %v2023 = vpop.permute.xlu0 %2022
      %v2026 = vsel %vm428, %v2017, 0
      %v2028 = vsel %vm428, %v2019, 0
      %2030 = vmatprep.subr.mxu0 0.0
      %2031 = vmatpush1.msra.mxu0 0.0
      %2032 = vmatprep.subr.mxu0 0.0
      %2033 = vmatpush1.msra.mxu0 0.0
      %2034 = vmatprep.subr.mxu0 0.0
      %2035 = vmatpush1.msra.mxu0 0.0
      %2036 = vmatprep.subr.mxu0 0.0
      %2037 = vmatpush1.msra.mxu0 0.0
      %2038 = vmatprep.subr.mxu0 0.0
      %2039 = vmatpush1.msra.mxu0 0.0
      %2040 = vmatprep.subr.mxu0 0.0
      %2041 = vmatpush1.msra.mxu0 0.0
      %2042 = vmatprep.subr.mxu0 0.0
      %2043 = vmatpush1.msra.mxu0 0.0
      %2044 = vmatprep.subr.mxu0 0.0
      %2045 = vmatpush1.msra.mxu0 0.0
      %2046 = vmatprep.subr.mxu0 0.0
      %2047 = vmatpush1.msra.mxu0 0.0
      %2048 = vmatprep.subr.mxu0 0.0
      %2049 = vmatpush1.msra.mxu0 0.0
      %2050 = vmatprep.subr.mxu0 0.0
      %2051 = vmatpush1.msra.mxu0 0.0
      %2052 = vmatprep.subr.mxu0 0.0
      %2053 = vmatpush1.msra.mxu0 0.0
      %2054 = vmatprep.subr.mxu0 0.0
      %2055 = vmatpush1.msra.mxu0 0.0
      %2056 = vmatprep.subr.mxu0 0.0
      %2057 = vmatpush1.msra.mxu0 0.0
      %2058 = vmatprep.subr.mxu0 0.0
      %2059 = vmatpush1.msra.mxu0 %v2023
      %2060 = vmatprep.subr.mxu0 0.0
      %2061 = vmatpush1.msra.mxu0 %v2021
      %2062 = vmatprep.subr.mxu0 0.0
      %2063 = vmatpush2.msra.mxu0 0.0
      %2064 = vmatprep.subr.mxu0 0.0
      %2065 = vmatpush2.msra.mxu0 0.0
      %2066 = vmatprep.subr.mxu0 0.0
      %2067 = vmatpush2.msra.mxu0 0.0
      %2068 = vmatprep.subr.mxu0 0.0
      %2069 = vmatpush2.msra.mxu0 0.0
      %2070 = vmatprep.subr.mxu0 0.0
      %2071 = vmatpush2.msra.mxu0 0.0
      %2072 = vmatprep.subr.mxu0 0.0
      %2073 = vmatpush2.msra.mxu0 0.0
      %2074 = vmatprep.subr.mxu0 0.0
      %2075 = vmatpush2.msra.mxu0 0.0
      %2076 = vmatprep.subr.mxu0 0.0
      %2077 = vmatpush2.msra.mxu0 0.0
      %2078 = vmatprep.subr.mxu0 0.0
      %2079 = vmatpush2.msra.mxu0 0.0
      %2080 = vmatprep.subr.mxu0 0.0
      %2081 = vmatpush2.msra.mxu0 0.0
      %2082 = vmatprep.subr.mxu0 0.0
      %2083 = vmatpush2.msra.mxu0 0.0
      %2084 = vmatprep.subr.mxu0 0.0
      %2085 = vmatpush2.msra.mxu0 0.0
      %2086 = vmatprep.subr.mxu0 0.0
      %2087 = vmatpush2.msra.mxu0 0.0
      %2088 = vmatprep.subr.mxu0 0.0
      %2089 = vmatpush2.msra.mxu0 0.0
      %2090 = vmatprep.subr.mxu0 0.0
      %2091 = vmatpush2.msra.mxu0 0.0
      %2092 = vmatprep.subr.mxu0 0.0
      %2093 = vmatpush2.msra.mxu0 0.0
      %2094 = vmatprep.mubr.f32.mxu0 0.0
      %2095 = vmatmul.mubr.f32.gmra.mxu0 %v2026
      %v2096 = vpop.f32.mrf.mxu0
      %v2097 = vadd.f32 0.0, %v2096
      %v2098 = vpop.f32.mrf.mxu0
      %2099 = vmatprep.mubr.f32.mxu0 0.0
      %2100 = vmatmul.mubr.f32.gmra.mxu0 %v2028
      %v2101 = vpop.f32.mrf.mxu0
      %v2102 = vadd.f32 0.0, %v2101
      %v2103 = vpop.f32.mrf.mxu0
      %2104 = vdwg.mxu0
      %v2105 = vadd.f32 %v1956, %v2097
      %v2106 = vadd.f32 %v1961, %v2102
      %2109 = vrot.lane.b32.xlu0 %v1235, 32
      %v2110 = vpop.permute.xlu0 %2109
      %2111 = vrot.lane.b32.xlu0 %v1236, 32
      %v2112 = vpop.permute.xlu0 %2111
      %2117 = vrot.lane.b32.xlu0 %v1670, 64
      %v2118 = vpop.permute.xlu0 %2117
      %2119 = vrot.lane.b32.xlu0 %v1671, 64
      %v2120 = vpop.permute.xlu0 %2119
      %2125 = vrot.lane.b32.xlu0 %v2105, 96
      %v2126 = vpop.permute.xlu0 %2125
      %2127 = vrot.lane.b32.xlu0 %v2106, 96
      %v2128 = vpop.permute.xlu0 %2127
      %v2131 = vsel %vm238, %v800, %v2110
      %v2132 = vsel %vm238, %v801, %v2112
      %vm2133 = vcmask 523264
      %v2134 = vsel %vm2133, %v2131, %v2118
      %v2135 = vsel %vm2133, %v2132, %v2120
      %vm2136 = vcmask 785408
      %v2137 = vsel %vm2136, %v2134, %v2126
      %v2138 = vsel %vm2136, %v2135, %v2128
      %v2139 = vld [vmem:[%s2] sm:$0x1]
      %v2141 = vlaneseq
      %v2142 = vshrl.u32 %v2141, 7
      %v2143 = vsub.s32 0, %v2142
      %v2144 = vrot.slane %v2139, %v2143
      %v2146 = vadd.f32 %v2137, %v2144
      %v2147 = vadd.f32 %v2138, %v2144
      %2148 = vst [vmem:[%s224] sm:$0xff] %v2146
      %2149 = vst [vmem:[%s224 + $0x8] sm:$0xff] %v2147
      %s2150 = smul.u32 2, %s15
      %p2151 = scmp.lt.s32.totalorder %s2150, 3
      %s2152 = scalar_select %p2151, %s2150, 3
      %s2153 = smul.addr %s2152, 8
      %s2154 = scalar_lea.vmem %s4, %s2153
      // Predicated region
      $region37: #{gat_he_forward.1} parent=35 // pred_check
        %p2155 = pneg %p127
      $region38: #{gat_he_forward.1} parent=35 // pred_check_branch
        %2157 = sbr.rel (%p2155) target = $region40
      $region39: #{gat_he_forward.1} parent=35 // pred_region
        %s2158 = smul.u32 2, %s15
      $region40: #{gat_he_forward.1} parent=35 // pred_fallthru
        _
    $region36: #{gat_he_forward.1} parent=5 // pred_fallthru
      _
    %p2159 = scmp.le.s32.totalorder 2, %s10
    // Predicated region
    $region41: #{gat_he_forward.1} parent=5 // pred_check
      %p2160 = pneg %p2159
    $region42: #{gat_he_forward.1} parent=5 // pred_check_branch
      %2162 = sbr.rel (%p2160) target = $region44
    $region43: #{gat_he_forward.1} parent=5 // pred_region
      %s2163 = ssub.s32 %s10, 2
      // Predicated region
      $region45: #{gat_he_forward.1} parent=43 // pred_check
        %p2164 = pneg %p133
      $region46: #{gat_he_forward.1} parent=43 // pred_check_branch
        %2166 = sbr.rel (%p2164) target = $region48
      $region47: #{gat_he_forward.1} parent=43 // pred_region
        %s2167 = smul.u32 2, %s16
        %p2168 = scmp.lt.s32.totalorder %s2167, 3
        %s2169 = scalar_select %p2168, %s2167, 3
        %s2170 = smul.addr %s2169, 8
        %s2171 = scalar_lea.vmem %s4, %s2170
      $region48: #{gat_he_forward.1} parent=43 // pred_fallthru
        _
    $region44: #{gat_he_forward.1} parent=5 // pred_fallthru
      _
  $region6: #{gat_he_forward.1} parent=0 // loop_footer
    %s14 = sadd.s32 1, %s10
  $region7: #{gat_he_forward.1} parent=0 // loop_footer_branch
    %9 = sbr.rel target = $region3
  $region8: #{gat_he_forward.1} parent=0 // loop_exit
    _

</llo_original>
